<compile_context>
chip_gen: v5e
topology: v5e:2x2
jax: 0.10.0
libtpu: 0.0.40
codegen_flags: <defaults>
</compile_context>

<pallas_src>
import jax
import jax.numpy as jnp
import numpy as np
from jax.experimental import pallas as pl
from jax.experimental.pallas import tpu as pltpu

_LANE = 128


def _round_up(n: int, m: int) -> int:
    return -(-n // m) * m


def _vmem_capacity_bytes() -> int:
    """Physical VMEM per TensorCore; conservative 64 MiB (v7x) if unknown."""
    try:
        cap = int(pltpu.get_tpu_info().vmem_capacity_bytes)
        if cap > 0:
            return cap
    except Exception:
        pass
    return 64 * 1024 * 1024


def _make_kernel(num_blocks: int, use_context: bool, hp: int):
    """Fused ResidualNet forward for one (tb, *) batch tile per grid step."""

    def kernel(x_ref, w0_ref, b0_ref, w1_ref, b1_ref, w2_ref, b2_ref,
               wf_ref, bf_ref, out_ref):
        mm = w0_ref.dtype                 # MXU input dtype (weights pre-cast)
        mm_is_sub32 = np.dtype(mm).itemsize < 4

        x = x_ref[...].astype(mm)
        # Fused prologue: one matmul produces the initial hidden state and
        # (context case) every block's gate pre-activation.
        pro = jnp.dot(x, w0_ref[...],
                      preferred_element_type=jnp.float32) + b0_ref[...]
        if use_context:
            h = pro[:, :hp]
            gate_dtype = mm if mm_is_sub32 else jnp.float32
            gates = jax.nn.sigmoid(pro[:, hp:]).astype(gate_dtype)
        else:
            h = pro

        # residual blocks (static Python loop; num_blocks is compile-time const)
        for k in range(num_blocks):
            # relu(cast(x)) == cast(relu(x)) bit-exactly; casting first runs
            # the ReLU at packed width on v6e/v7x.
            t = jnp.maximum(h.astype(mm), 0.0)
            t = jnp.dot(t, w1_ref[k],
                        preferred_element_type=jnp.float32) + b1_ref[k]
            t = jnp.maximum(t.astype(mm), 0.0)
            # dropout with p=0.0 is the identity; use_batch_norm=False -> omitted
            t = jnp.dot(t, w2_ref[k],
                        preferred_element_type=jnp.float32) + b2_ref[k]
            if use_context:
                # glu(cat(t, gate_proj), dim=1) == t * sigmoid(gate_proj)
                t = t * gates[:, k * hp:(k + 1) * hp]
            h = h + t                     # f32 residual accumulator

        out = jnp.dot(h.astype(mm), wf_ref[...],
                      preferred_element_type=jnp.float32) + bf_ref[...]
        out_ref[...] = out.astype(out_ref.dtype)

    return kernel


def _prepare_params(params, use_context, matmul_dtype):
    """Zero-pad hidden/out feature dims to lane multiples, cast weight matrices
    to the matmul dtype, reshape biases to (.., 1, Hp) rows, and build the fused
    prologue weight [[w0x, 0], [w0c, wc]] / bias [b0, bc]."""
    H = params["w1"].shape[-1]
    nb = params["w1"].shape[0]
    out_f = params["wf"].shape[-1]
    in_f = params["w0x"].shape[0]
    Hp = _round_up(H, _LANE)
    Op = _round_up(out_f, _LANE)
    dh, do = Hp - H, Op - out_f

    prep = {}
    if use_context:
        C = params["w0c"].shape[0]
        w0x = jnp.pad(params["w0x"], ((0, 0), (0, dh)))               # (in_f, Hp)
        w0c = jnp.pad(params["w0c"], ((0, 0), (0, dh)))               # (C, Hp)
        wc = jnp.pad(params["wc"], ((0, 0), (0, 0), (0, dh)))         # (nb, C, Hp)
        wc = jnp.transpose(wc, (1, 0, 2)).reshape(C, nb * Hp)         # (C, nb*Hp)
        top = jnp.concatenate(
            [w0x, jnp.zeros((in_f, nb * Hp), w0x.dtype)], axis=1)
        bot = jnp.concatenate([w0c, wc], axis=1)
        prep["w0"] = jnp.concatenate([top, bot], axis=0).astype(matmul_dtype)
        b0 = jnp.pad(params["b0"], (0, dh))
        bc = jnp.pad(params["bc"], ((0, 0), (0, dh))).reshape(nb * Hp)
        prep["b0"] = jnp.concatenate([b0, bc]).reshape(1, -1).astype(jnp.float32)
    else:
        prep["w0"] = jnp.pad(params["w0x"], ((0, 0), (0, dh))).astype(matmul_dtype)
        prep["b0"] = jnp.pad(params["b0"].reshape(1, -1),
                             ((0, 0), (0, dh))).astype(jnp.float32)

    prep["w1"] = jnp.pad(params["w1"], ((0, 0), (0, dh), (0, dh))).astype(matmul_dtype)
    prep["w2"] = jnp.pad(params["w2"], ((0, 0), (0, dh), (0, dh))).astype(matmul_dtype)
    prep["b1"] = jnp.pad(params["b1"], ((0, 0), (0, dh)))[:, None, :].astype(jnp.float32)
    prep["b2"] = jnp.pad(params["b2"], ((0, 0), (0, dh)))[:, None, :].astype(jnp.float32)
    prep["wf"] = jnp.pad(params["wf"], ((0, dh), (0, do))).astype(matmul_dtype)
    prep["bf"] = jnp.pad(params["bf"].reshape(1, -1),
                         ((0, 0), (0, do))).astype(jnp.float32)
    return prep, Hp, Op


def residual_net_forward(x, params, context=None, *, tb=512,
                         matmul_dtype=jnp.bfloat16):
    """Pallas forward for ResidualNet.

    x: (B, in_features), context: (B, C) or None.
    tb: requested batch tile (rows per grid step); clipped / VMEM-adapted.
    matmul_dtype: dtype fed to the MXU (bf16 recommended; f32 for exactness).
    """
    use_context = context is not None
    B, _ = x.shape
    out_features = params["wf"].shape[-1]
    num_blocks = params["w1"].shape[0]

    prep, Hp, Op = _prepare_params(params, use_context, matmul_dtype)

    xin = jnp.concatenate([x, context], axis=1) if use_context else x
    in_total = xin.shape[1]
    xbytes = np.dtype(x.dtype).itemsize

    order = ["w0", "b0", "w1", "b1", "w2", "b2", "wf", "bf"]
    weight_bytes = sum(int(np.prod(prep[n].shape)) * prep[n].dtype.itemsize
                       for n in order)

    mm_is_sub32 = np.dtype(matmul_dtype).itemsize < 4
    mult = 16 if mm_is_sub32 else 8   # sublane packing for bf16 MXU operands

    # --- batch tile selection ------------------------------------------------
    tb = max(mult, min(int(tb), _round_up(B, mult)))
    tb = _round_up(tb, mult)
    # Megacore: keep >= 2 grid steps for real batches so the "parallel" axis
    # can shard across v7x's 2 TensorCores (negligible cost on 1-TC chips).
    if B >= 128:
        tb = min(tb, _round_up(-(-_round_up(B, mult) // 2), mult))

    vmem_cap = _vmem_capacity_bytes()
    budget = int(0.8 * vmem_cap)
    hard_cap = int(0.85 * vmem_cap)

    def footprint(t, weight_buffers):
        io = 2 * (t * in_total * xbytes + t * Op * xbytes)   # double-buffered I/O
        act = t * Hp * 4 * 6                                  # f32 hidden live set
        if use_context:
            act += t * (1 + num_blocks) * Hp * 4              # fused prologue output
            act += t * num_blocks * Hp * (2 if mm_is_sub32 else 4)  # gates
        return weight_buffers * weight_bytes + io + act

    # Shrink tb until single-buffered weights + I/O + activations fit the budget.
    while tb > mult and footprint(tb, 1) > budget:
        tb = _round_up(max(tb // 2, mult), mult)

    Bp = _round_up(B, tb)
    xp = jnp.pad(xin, ((0, Bp - B), (0, 0)))

    kernel = _make_kernel(num_blocks, use_context, Hp)

    def run(single_buffer_weights):
        in_specs = [pl.BlockSpec((tb, in_total), lambda i: (i, 0))]
        args = [xp]
        for name in order:
            w = prep[name]
            idx = lambda i, n=w.ndim: (0,) * n
            if single_buffer_weights:
                # Grid-invariant weights never re-fetch: drop the dead second
                # buffer (the single biggest VMEM lever under v7x's 64 MiB).
                spec = pl.BlockSpec(w.shape, idx, pipeline_mode=pl.Buffered(1))
            else:
                spec = pl.BlockSpec(w.shape, idx)
            in_specs.append(spec)
            args.append(w)
        out_specs = pl.BlockSpec((tb, Op), lambda i: (i, 0))  # lane-dense output

        wbuf = 1 if single_buffer_weights else 2
        vmem_limit = int(1.25 * footprint(tb, wbuf))
        vmem_limit = min(max(vmem_limit, 32 * 1024 * 1024), hard_cap)

        return pl.pallas_call(
            kernel,
            out_shape=jax.ShapeDtypeStruct((Bp, Op), x.dtype),
            grid_spec=pltpu.PrefetchScalarGridSpec(
                num_scalar_prefetch=0,
                grid=(Bp // tb,),
                in_specs=in_specs,
                out_specs=out_specs,
            ),
            compiler_params=pltpu.CompilerParams(
                dimension_semantics=("parallel",),
                vmem_limit_bytes=vmem_limit,
            ),
        )(*args)

    try:
        out = run(True)
    except Exception:
        # Fallback if single-buffered pipeline_mode is rejected by this JAX build.
        out = run(False)

    return out[:B, :out_features]


def init_params(key, in_features, out_features, hidden_features,
                context_features=None, num_blocks=2, dtype=jnp.float32):
    """Mirror torch.nn.Linear default init (uniform +-1/sqrt(fan_in)) and the
    block's zero_initialization (uniform +-0.001 on each block's last linear)."""
    keys = iter(jax.random.split(key, 8 * (num_blocks + 2)))

    def linear(fan_in, fan_out, bound=None):
        b = bound if bound is not None else 1.0 / np.sqrt(fan_in)
        w = jax.random.uniform(next(keys), (fan_in, fan_out), dtype, -b, b)
        bias = jax.random.uniform(next(keys), (fan_out,), dtype, -b, b)
        return w, bias

    in_total = in_features + (context_features or 0)
    w0, b0 = linear(in_total, hidden_features)
    params = {"w0x": w0[:in_features], "b0": b0}
    if context_features is not None:
        params["w0c"] = w0[in_features:]

    w1s, b1s, w2s, b2s, wcs, bcs = [], [], [], [], [], []
    for _ in range(num_blocks):
        w1, b1 = linear(hidden_features, hidden_features)
        w2, b2 = linear(hidden_features, hidden_features, bound=0.001)
        w1s.append(w1); b1s.append(b1); w2s.append(w2); b2s.append(b2)
        if context_features is not None:
            wc, bc = linear(context_features, hidden_features)
            wcs.append(wc); bcs.append(bc)

    params["w1"] = jnp.stack(w1s); params["b1"] = jnp.stack(b1s)
    params["w2"] = jnp.stack(w2s); params["b2"] = jnp.stack(b2s)
    if context_features is not None:
        params["wc"] = jnp.stack(wcs); params["bc"] = jnp.stack(bcs)

    wf, bf = linear(hidden_features, out_features)
    params["wf"] = wf; params["bf"] = bf
    return params


def reference_forward(x, params, context=None):
    """Pure-JAX reference (mirrors the PyTorch forward exactly)."""
    h = x @ params["w0x"] + params["b0"]
    if context is not None:
        h = h + context @ params["w0c"]
    for k in range(params["w1"].shape[0]):
        t = jnp.maximum(h, 0.0)
        t = t @ params["w1"][k] + params["b1"][k]
        t = jnp.maximum(t, 0.0)
        t = t @ params["w2"][k] + params["b2"][k]
        if context is not None:
            gate = context @ params["wc"][k] + params["bc"][k]
            t = t * jax.nn.sigmoid(gate)
        h = h + t
    return h @ params["wf"] + params["bf"]


if __name__ == "__main__":
    B, in_f, hid, out_f, ctx_f, nb = 16, 16, 32, 8, 4, 2

    key = jax.random.PRNGKey(0)
    kx, kc, kp1, kp2, kx2, kc2, kp3 = jax.random.split(key, 7)
    x = jax.random.normal(kx, (B, in_f), jnp.float32)
    ctx = jax.random.normal(kc, (B, ctx_f), jnp.float32)

    # --- context=None path, f32 matmuls (exact match) ---
    p_nc = init_params(kp1, in_f, out_f, hid, None, nb)
    out_nc = jax.block_until_ready(
        residual_net_forward(x, p_nc, None, tb=256, matmul_dtype=jnp.float32))
    np.testing.assert_allclose(np.asarray(out_nc),
                               np.asarray(reference_forward(x, p_nc, None)),
                               rtol=1e-5, atol=1e-5)

    # --- context path (GLU gating), f32 matmuls ---
    p_c = init_params(kp2, in_f, out_f, hid, ctx_f, nb)
    out_c = jax.block_until_ready(
        residual_net_forward(x, p_c, ctx, tb=256, matmul_dtype=jnp.float32))
    np.testing.assert_allclose(np.asarray(out_c),
                               np.asarray(reference_forward(x, p_c, ctx)),
                               rtol=1e-5, atol=1e-5)

    # --- context path, bf16 MXU inputs / f32 accumulation (relaxed tolerance) ---
    out_bf = jax.block_until_ready(
        residual_net_forward(x, p_c, ctx, tb=256, matmul_dtype=jnp.bfloat16))
    np.testing.assert_allclose(np.asarray(out_bf),
                               np.asarray(reference_forward(x, p_c, ctx)),
                               rtol=5e-2, atol=5e-2)

    # --- ragged batch + padded hidden/out, multi-step grid (megacore clamp) ---
    B2, hid2, out2, ctxf2 = 300, 96, 10, 5
    x2 = jax.random.normal(kx2, (B2, in_f), jnp.float32)
    c2 = jax.random.normal(kc2, (B2, ctxf2), jnp.float32)
    p2 = init_params(kp3, in_f, out2, hid2, ctxf2, nb)
    out2v = jax.block_until_ready(
        residual_net_forward(x2, p2, c2, tb=128, matmul_dtype=jnp.float32))
    np.testing.assert_allclose(np.asarray(out2v),
                               np.asarray(reference_forward(x2, p2, c2)),
                               rtol=1e-4, atol=1e-4)

    print("KERNEL_OK")
</pallas_src>

<mosaic_0001>
module attributes {stable_mosaic.version = 11 : i64} {
  func.func @kernel(%arg0: i32, %arg1: memref<16x16xf32, #tpu.memory_space<vmem>>, %arg2: memref<16x128xf32, #tpu.memory_space<vmem>>, %arg3: memref<1x128xf32, #tpu.memory_space<vmem>>, %arg4: memref<2x128x128xf32, #tpu.memory_space<vmem>>, %arg5: memref<2x1x128xf32, #tpu.memory_space<vmem>>, %arg6: memref<2x128x128xf32, #tpu.memory_space<vmem>>, %arg7: memref<2x1x128xf32, #tpu.memory_space<vmem>>, %arg8: memref<128x128xf32, #tpu.memory_space<vmem>>, %arg9: memref<1x128xf32, #tpu.memory_space<vmem>>, %arg10: memref<16x128xf32, #tpu.memory_space<vmem>>) attributes {dimension_semantics = [#tpu.dimension_semantics<parallel>], iteration_bounds = array<i64: 1>, scalar_prefetch = 0 : i64, scratch_operands = 0 : i64, tpu.core_type = #tpu.core_type<tc>, window_params = [{transform_indices = @transform_0, window_bounds = array<i64: 16, 16>}, {pipeline_mode = #tpu.pipeline_mode<synchronous>, transform_indices = @transform_1, window_bounds = array<i64: 16, 128>}, {pipeline_mode = #tpu.pipeline_mode<synchronous>, transform_indices = @transform_2, window_bounds = array<i64: 1, 128>}, {pipeline_mode = #tpu.pipeline_mode<synchronous>, transform_indices = @transform_3, window_bounds = array<i64: 2, 128, 128>}, {pipeline_mode = #tpu.pipeline_mode<synchronous>, transform_indices = @transform_4, window_bounds = array<i64: 2, 1, 128>}, {pipeline_mode = #tpu.pipeline_mode<synchronous>, transform_indices = @transform_5, window_bounds = array<i64: 2, 128, 128>}, {pipeline_mode = #tpu.pipeline_mode<synchronous>, transform_indices = @transform_6, window_bounds = array<i64: 2, 1, 128>}, {pipeline_mode = #tpu.pipeline_mode<synchronous>, transform_indices = @transform_7, window_bounds = array<i64: 128, 128>}, {pipeline_mode = #tpu.pipeline_mode<synchronous>, transform_indices = @transform_8, window_bounds = array<i64: 1, 128>}, {transform_indices = @transform_9, window_bounds = array<i64: 16, 128>}]} {
    %c0 = arith.constant 0 : index
    %c0_0 = arith.constant 0 : index
    %0 = vector.load %arg1[%c0, %c0_0] : memref<16x16xf32, #tpu.memory_space<vmem>>, vector<16x16xf32>
    %c0_1 = arith.constant 0 : index
    %c0_2 = arith.constant 0 : index
    %1 = vector.load %arg2[%c0_1, %c0_2] : memref<16x128xf32, #tpu.memory_space<vmem>>, vector<16x128xf32>
    %cst = arith.constant dense<0.000000e+00> : vector<16x128xf32>
    %2 = tpu.matmul %0, %1, %cst {dimension_numbers = #tpu.dot_dimension_numbers<[1], [0], [0], [1], [0, 0, 1, 1], [], []>} : vector<16x16xf32>, vector<16x128xf32>, vector<16x128xf32> -> vector<16x128xf32>
    %c0_3 = arith.constant 0 : index
    %c0_4 = arith.constant 0 : index
    %3 = vector.load %arg3[%c0_3, %c0_4] : memref<1x128xf32, #tpu.memory_space<vmem>>, vector<1x128xf32>
    %4 = vector.broadcast %3 : vector<1x128xf32> to vector<16x128xf32>
    %5 = arith.addf %2, %4 : vector<16x128xf32>
    %cst_5 = arith.constant 0.000000e+00 : f32
    %6 = vector.broadcast %cst_5 : f32 to vector<16x128xf32>
    %7 = arith.maximumf %5, %6 : vector<16x128xf32>
    %c0_6 = arith.constant 0 : index
    %c0_7 = arith.constant 0 : index
    %c0_8 = arith.constant 0 : index
    %8 = vector.load %arg4[%c0_6, %c0_7, %c0_8] : memref<2x128x128xf32, #tpu.memory_space<vmem>>, vector<1x128x128xf32>
    %9 = vector.shape_cast %8 : vector<1x128x128xf32> to vector<128x128xf32>
    %cst_9 = arith.constant dense<0.000000e+00> : vector<16x128xf32>
    %10 = tpu.matmul %7, %9, %cst_9 {dimension_numbers = #tpu.dot_dimension_numbers<[1], [0], [0], [1], [0, 0, 1, 1], [], []>} : vector<16x128xf32>, vector<128x128xf32>, vector<16x128xf32> -> vector<16x128xf32>
    %c0_10 = arith.constant 0 : index
    %c0_11 = arith.constant 0 : index
    %c0_12 = arith.constant 0 : index
    %11 = vector.load %arg5[%c0_10, %c0_11, %c0_12] : memref<2x1x128xf32, #tpu.memory_space<vmem>>, vector<1x1x128xf32>
    %12 = vector.shape_cast %11 : vector<1x1x128xf32> to vector<1x128xf32>
    %13 = vector.broadcast %12 : vector<1x128xf32> to vector<16x128xf32>
    %14 = arith.addf %10, %13 : vector<16x128xf32>
    %cst_13 = arith.constant 0.000000e+00 : f32
    %15 = vector.broadcast %cst_13 : f32 to vector<16x128xf32>
    %16 = arith.maximumf %14, %15 : vector<16x128xf32>
    %c0_14 = arith.constant 0 : index
    %c0_15 = arith.constant 0 : index
    %c0_16 = arith.constant 0 : index
    %17 = vector.load %arg6[%c0_14, %c0_15, %c0_16] : memref<2x128x128xf32, #tpu.memory_space<vmem>>, vector<1x128x128xf32>
    %18 = vector.shape_cast %17 : vector<1x128x128xf32> to vector<128x128xf32>
    %cst_17 = arith.constant dense<0.000000e+00> : vector<16x128xf32>
    %19 = tpu.matmul %16, %18, %cst_17 {dimension_numbers = #tpu.dot_dimension_numbers<[1], [0], [0], [1], [0, 0, 1, 1], [], []>} : vector<16x128xf32>, vector<128x128xf32>, vector<16x128xf32> -> vector<16x128xf32>
    %c0_18 = arith.constant 0 : index
    %c0_19 = arith.constant 0 : index
    %c0_20 = arith.constant 0 : index
    %20 = vector.load %arg7[%c0_18, %c0_19, %c0_20] : memref<2x1x128xf32, #tpu.memory_space<vmem>>, vector<1x1x128xf32>
    %21 = vector.shape_cast %20 : vector<1x1x128xf32> to vector<1x128xf32>
    %22 = vector.broadcast %21 : vector<1x128xf32> to vector<16x128xf32>
    %23 = arith.addf %19, %22 : vector<16x128xf32>
    %24 = arith.addf %5, %23 : vector<16x128xf32>
    %cst_21 = arith.constant 0.000000e+00 : f32
    %25 = vector.broadcast %cst_21 : f32 to vector<16x128xf32>
    %26 = arith.maximumf %24, %25 : vector<16x128xf32>
    %c1 = arith.constant 1 : index
    %c0_22 = arith.constant 0 : index
    %c0_23 = arith.constant 0 : index
    %27 = vector.load %arg4[%c1, %c0_22, %c0_23] : memref<2x128x128xf32, #tpu.memory_space<vmem>>, vector<1x128x128xf32>
    %28 = vector.shape_cast %27 : vector<1x128x128xf32> to vector<128x128xf32>
    %cst_24 = arith.constant dense<0.000000e+00> : vector<16x128xf32>
    %29 = tpu.matmul %26, %28, %cst_24 {dimension_numbers = #tpu.dot_dimension_numbers<[1], [0], [0], [1], [0, 0, 1, 1], [], []>} : vector<16x128xf32>, vector<128x128xf32>, vector<16x128xf32> -> vector<16x128xf32>
    %c1_25 = arith.constant 1 : index
    %c0_26 = arith.constant 0 : index
    %c0_27 = arith.constant 0 : index
    %30 = vector.load %arg5[%c1_25, %c0_26, %c0_27] : memref<2x1x128xf32, #tpu.memory_space<vmem>>, vector<1x1x128xf32>
    %31 = vector.shape_cast %30 : vector<1x1x128xf32> to vector<1x128xf32>
    %32 = vector.broadcast %31 : vector<1x128xf32> to vector<16x128xf32>
    %33 = arith.addf %29, %32 : vector<16x128xf32>
    %cst_28 = arith.constant 0.000000e+00 : f32
    %34 = vector.broadcast %cst_28 : f32 to vector<16x128xf32>
    %35 = arith.maximumf %33, %34 : vector<16x128xf32>
    %c1_29 = arith.constant 1 : index
    %c0_30 = arith.constant 0 : index
    %c0_31 = arith.constant 0 : index
    %36 = vector.load %arg6[%c1_29, %c0_30, %c0_31] : memref<2x128x128xf32, #tpu.memory_space<vmem>>, vector<1x128x128xf32>
    %37 = vector.shape_cast %36 : vector<1x128x128xf32> to vector<128x128xf32>
    %cst_32 = arith.constant dense<0.000000e+00> : vector<16x128xf32>
    %38 = tpu.matmul %35, %37, %cst_32 {dimension_numbers = #tpu.dot_dimension_numbers<[1], [0], [0], [1], [0, 0, 1, 1], [], []>} : vector<16x128xf32>, vector<128x128xf32>, vector<16x128xf32> -> vector<16x128xf32>
    %c1_33 = arith.constant 1 : index
    %c0_34 = arith.constant 0 : index
    %c0_35 = arith.constant 0 : index
    %39 = vector.load %arg7[%c1_33, %c0_34, %c0_35] : memref<2x1x128xf32, #tpu.memory_space<vmem>>, vector<1x1x128xf32>
    %40 = vector.shape_cast %39 : vector<1x1x128xf32> to vector<1x128xf32>
    %41 = vector.broadcast %40 : vector<1x128xf32> to vector<16x128xf32>
    %42 = arith.addf %38, %41 : vector<16x128xf32>
    %43 = arith.addf %24, %42 : vector<16x128xf32>
    %c0_36 = arith.constant 0 : index
    %c0_37 = arith.constant 0 : index
    %44 = vector.load %arg8[%c0_36, %c0_37] : memref<128x128xf32, #tpu.memory_space<vmem>>, vector<128x128xf32>
    %cst_38 = arith.constant dense<0.000000e+00> : vector<16x128xf32>
    %45 = tpu.matmul %43, %44, %cst_38 {dimension_numbers = #tpu.dot_dimension_numbers<[1], [0], [0], [1], [0, 0, 1, 1], [], []>} : vector<16x128xf32>, vector<128x128xf32>, vector<16x128xf32> -> vector<16x128xf32>
    %c0_39 = arith.constant 0 : index
    %c0_40 = arith.constant 0 : index
    %46 = vector.load %arg9[%c0_39, %c0_40] : memref<1x128xf32, #tpu.memory_space<vmem>>, vector<1x128xf32>
    %47 = vector.broadcast %46 : vector<1x128xf32> to vector<16x128xf32>
    %48 = arith.addf %45, %47 : vector<16x128xf32>
    %c0_41 = arith.constant 0 : index
    %c0_42 = arith.constant 0 : index
    %49 = vector.load %arg10[%c0_41, %c0_42] : memref<16x128xf32, #tpu.memory_space<vmem>>, vector<16x128xf32>
    tpu.vector_store %arg10[%c0_41, %c0_42], %48 {strides = array<i32>} : memref<16x128xf32, #tpu.memory_space<vmem>>, vector<16x128xf32>,
    return
  }
  func.func @transform_0(%arg0: i32) -> (i32, i32) {
    %c0_i32 = arith.constant 0 : i32
    %c0_i32_0 = arith.constant 0 : i32
    return %arg0, %c0_i32 : i32, i32
  }
  func.func @transform_1(%arg0: i32) -> (i32, i32) {
    %c0_i32 = arith.constant 0 : i32
    %c0_i32_0 = arith.constant 0 : i32
    %c0_i32_1 = arith.constant 0 : i32
    return %c0_i32, %c0_i32_0 : i32, i32
  }
  func.func @transform_2(%arg0: i32) -> (i32, i32) {
    %c0_i32 = arith.constant 0 : i32
    %c0_i32_0 = arith.constant 0 : i32
    %c0_i32_1 = arith.constant 0 : i32
    return %c0_i32, %c0_i32_0 : i32, i32
  }
  func.func @transform_3(%arg0: i32) -> (i32, i32, i32) {
    %c0_i32 = arith.constant 0 : i32
    %c0_i32_0 = arith.constant 0 : i32
    %c0_i32_1 = arith.constant 0 : i32
    %c0_i32_2 = arith.constant 0 : i32
    return %c0_i32, %c0_i32_0, %c0_i32_1 : i32, i32, i32
  }
  func.func @transform_4(%arg0: i32) -> (i32, i32, i32) {
    %c0_i32 = arith.constant 0 : i32
    %c0_i32_0 = arith.constant 0 : i32
    %c0_i32_1 = arith.constant 0 : i32
    %c0_i32_2 = arith.constant 0 : i32
    return %c0_i32, %c0_i32_0, %c0_i32_1 : i32, i32, i32
  }
  func.func @transform_5(%arg0: i32) -> (i32, i32, i32) {
    %c0_i32 = arith.constant 0 : i32
    %c0_i32_0 = arith.constant 0 : i32
    %c0_i32_1 = arith.constant 0 : i32
    %c0_i32_2 = arith.constant 0 : i32
    return %c0_i32, %c0_i32_0, %c0_i32_1 : i32, i32, i32
  }
  func.func @transform_6(%arg0: i32) -> (i32, i32, i32) {
    %c0_i32 = arith.constant 0 : i32
    %c0_i32_0 = arith.constant 0 : i32
    %c0_i32_1 = arith.constant 0 : i32
    %c0_i32_2 = arith.constant 0 : i32
    return %c0_i32, %c0_i32_0, %c0_i32_1 : i32, i32, i32
  }
  func.func @transform_7(%arg0: i32) -> (i32, i32) {
    %c0_i32 = arith.constant 0 : i32
    %c0_i32_0 = arith.constant 0 : i32
    %c0_i32_1 = arith.constant 0 : i32
    return %c0_i32, %c0_i32_0 : i32, i32
  }
  func.func @transform_8(%arg0: i32) -> (i32, i32) {
    %c0_i32 = arith.constant 0 : i32
    %c0_i32_0 = arith.constant 0 : i32
    %c0_i32_1 = arith.constant 0 : i32
    return %c0_i32, %c0_i32_0 : i32, i32
  }
  func.func @transform_9(%arg0: i32) -> (i32, i32) {
    %c0_i32 = arith.constant 0 : i32
    %c0_i32_0 = arith.constant 0 : i32
    return %arg0, %c0_i32 : i32, i32
  }
}

module attributes {stable_mosaic.version = 11 : i64} {
  func.func @kernel(%arg0: i32, %arg1: memref<16x16xf32, #tpu.memory_space<vmem>>, %arg2: memref<16x128xf32, #tpu.memory_space<vmem>>, %arg3: memref<1x128xf32, #tpu.memory_space<vmem>>, %arg4: memref<2x128x128xf32, #tpu.memory_space<vmem>>, %arg5: memref<2x1x128xf32, #tpu.memory_space<vmem>>, %arg6: memref<2x128x128xf32, #tpu.memory_space<vmem>>, %arg7: memref<2x1x128xf32, #tpu.memory_space<vmem>>, %arg8: memref<128x128xf32, #tpu.memory_space<vmem>>, %arg9: memref<1x128xf32, #tpu.memory_space<vmem>>, %arg10: memref<16x128xf32, #tpu.memory_space<vmem>>) attributes {dimension_semantics = [#tpu.dimension_semantics<parallel>], iteration_bounds = array<i64: 1>, scalar_prefetch = 0 : i64, scratch_operands = 0 : i64, tpu.core_type = #tpu.core_type<tc>, window_params = [{transform_indices = @transform_0, window_bounds = array<i64: 16, 16>}, {pipeline_mode = #tpu.pipeline_mode<synchronous>, transform_indices = @transform_1, window_bounds = array<i64: 16, 128>}, {pipeline_mode = #tpu.pipeline_mode<synchronous>, transform_indices = @transform_2, window_bounds = array<i64: 1, 128>}, {pipeline_mode = #tpu.pipeline_mode<synchronous>, transform_indices = @transform_3, window_bounds = array<i64: 2, 128, 128>}, {pipeline_mode = #tpu.pipeline_mode<synchronous>, transform_indices = @transform_4, window_bounds = array<i64: 2, 1, 128>}, {pipeline_mode = #tpu.pipeline_mode<synchronous>, transform_indices = @transform_5, window_bounds = array<i64: 2, 128, 128>}, {pipeline_mode = #tpu.pipeline_mode<synchronous>, transform_indices = @transform_6, window_bounds = array<i64: 2, 1, 128>}, {pipeline_mode = #tpu.pipeline_mode<synchronous>, transform_indices = @transform_7, window_bounds = array<i64: 128, 128>}, {pipeline_mode = #tpu.pipeline_mode<synchronous>, transform_indices = @transform_8, window_bounds = array<i64: 1, 128>}, {transform_indices = @transform_9, window_bounds = array<i64: 16, 128>}]} {
    %c0 = arith.constant 0 : index
    %c0_0 = arith.constant 0 : index
    %0 = vector.load %arg1[%c0, %c0_0] : memref<16x16xf32, #tpu.memory_space<vmem>>, vector<16x16xf32>
    %c0_1 = arith.constant 0 : index
    %c0_2 = arith.constant 0 : index
    %1 = vector.load %arg2[%c0_1, %c0_2] : memref<16x128xf32, #tpu.memory_space<vmem>>, vector<16x128xf32>
    %cst = arith.constant dense<0.000000e+00> : vector<16x128xf32>
    %2 = tpu.matmul %0, %1, %cst {dimension_numbers = #tpu.dot_dimension_numbers<[1], [0], [0], [1], [0, 0, 1, 1], [], []>} : vector<16x16xf32>, vector<16x128xf32>, vector<16x128xf32> -> vector<16x128xf32>
    %c0_3 = arith.constant 0 : index
    %c0_4 = arith.constant 0 : index
    %3 = vector.load %arg3[%c0_3, %c0_4] : memref<1x128xf32, #tpu.memory_space<vmem>>, vector<1x128xf32>
    %4 = vector.broadcast %3 : vector<1x128xf32> to vector<16x128xf32>
    %5 = arith.addf %2, %4 : vector<16x128xf32>
    %cst_5 = arith.constant 0.000000e+00 : f32
    %6 = vector.broadcast %cst_5 : f32 to vector<16x128xf32>
    %7 = arith.maximumf %5, %6 : vector<16x128xf32>
    %c0_6 = arith.constant 0 : index
    %c0_7 = arith.constant 0 : index
    %c0_8 = arith.constant 0 : index
    %8 = vector.load %arg4[%c0_6, %c0_7, %c0_8] : memref<2x128x128xf32, #tpu.memory_space<vmem>>, vector<1x128x128xf32>
    %9 = vector.shape_cast %8 : vector<1x128x128xf32> to vector<128x128xf32>
    %cst_9 = arith.constant dense<0.000000e+00> : vector<16x128xf32>
    %10 = tpu.matmul %7, %9, %cst_9 {dimension_numbers = #tpu.dot_dimension_numbers<[1], [0], [0], [1], [0, 0, 1, 1], [], []>} : vector<16x128xf32>, vector<128x128xf32>, vector<16x128xf32> -> vector<16x128xf32>
    %c0_10 = arith.constant 0 : index
    %c0_11 = arith.constant 0 : index
    %c0_12 = arith.constant 0 : index
    %11 = vector.load %arg5[%c0_10, %c0_11, %c0_12] : memref<2x1x128xf32, #tpu.memory_space<vmem>>, vector<1x1x128xf32>
    %12 = vector.shape_cast %11 : vector<1x1x128xf32> to vector<1x128xf32>
    %13 = vector.broadcast %12 : vector<1x128xf32> to vector<16x128xf32>
    %14 = arith.addf %10, %13 : vector<16x128xf32>
    %cst_13 = arith.constant 0.000000e+00 : f32
    %15 = vector.broadcast %cst_13 : f32 to vector<16x128xf32>
    %16 = arith.maximumf %14, %15 : vector<16x128xf32>
    %c0_14 = arith.constant 0 : index
    %c0_15 = arith.constant 0 : index
    %c0_16 = arith.constant 0 : index
    %17 = vector.load %arg6[%c0_14, %c0_15, %c0_16] : memref<2x128x128xf32, #tpu.memory_space<vmem>>, vector<1x128x128xf32>
    %18 = vector.shape_cast %17 : vector<1x128x128xf32> to vector<128x128xf32>
    %cst_17 = arith.constant dense<0.000000e+00> : vector<16x128xf32>
    %19 = tpu.matmul %16, %18, %cst_17 {dimension_numbers = #tpu.dot_dimension_numbers<[1], [0], [0], [1], [0, 0, 1, 1], [], []>} : vector<16x128xf32>, vector<128x128xf32>, vector<16x128xf32> -> vector<16x128xf32>
    %c0_18 = arith.constant 0 : index
    %c0_19 = arith.constant 0 : index
    %c0_20 = arith.constant 0 : index
    %20 = vector.load %arg7[%c0_18, %c0_19, %c0_20] : memref<2x1x128xf32, #tpu.memory_space<vmem>>, vector<1x1x128xf32>
    %21 = vector.shape_cast %20 : vector<1x1x128xf32> to vector<1x128xf32>
    %22 = vector.broadcast %21 : vector<1x128xf32> to vector<16x128xf32>
    %23 = arith.addf %19, %22 : vector<16x128xf32>
    %24 = arith.addf %5, %23 : vector<16x128xf32>
    %cst_21 = arith.constant 0.000000e+00 : f32
    %25 = vector.broadcast %cst_21 : f32 to vector<16x128xf32>
    %26 = arith.maximumf %24, %25 : vector<16x128xf32>
    %c1 = arith.constant 1 : index
    %c0_22 = arith.constant 0 : index
    %c0_23 = arith.constant 0 : index
    %27 = vector.load %arg4[%c1, %c0_22, %c0_23] : memref<2x128x128xf32, #tpu.memory_space<vmem>>, vector<1x128x128xf32>
    %28 = vector.shape_cast %27 : vector<1x128x128xf32> to vector<128x128xf32>
    %cst_24 = arith.constant dense<0.000000e+00> : vector<16x128xf32>
    %29 = tpu.matmul %26, %28, %cst_24 {dimension_numbers = #tpu.dot_dimension_numbers<[1], [0], [0], [1], [0, 0, 1, 1], [], []>} : vector<16x128xf32>, vector<128x128xf32>, vector<16x128xf32> -> vector<16x128xf32>
    %c1_25 = arith.constant 1 : index
    %c0_26 = arith.constant 0 : index
    %c0_27 = arith.constant 0 : index
    %30 = vector.load %arg5[%c1_25, %c0_26, %c0_27] : memref<2x1x128xf32, #tpu.memory_space<vmem>>, vector<1x1x128xf32>
    %31 = vector.shape_cast %30 : vector<1x1x128xf32> to vector<1x128xf32>
    %32 = vector.broadcast %31 : vector<1x128xf32> to vector<16x128xf32>
    %33 = arith.addf %29, %32 : vector<16x128xf32>
    %cst_28 = arith.constant 0.000000e+00 : f32
    %34 = vector.broadcast %cst_28 : f32 to vector<16x128xf32>
    %35 = arith.maximumf %33, %34 : vector<16x128xf32>
    %c1_29 = arith.constant 1 : index
    %c0_30 = arith.constant 0 : index
    %c0_31 = arith.constant 0 : index
    %36 = vector.load %arg6[%c1_29, %c0_30, %c0_31] : memref<2x128x128xf32, #tpu.memory_space<vmem>>, vector<1x128x128xf32>
    %37 = vector.shape_cast %36 : vector<1x128x128xf32> to vector<128x128xf32>
    %cst_32 = arith.constant dense<0.000000e+00> : vector<16x128xf32>
    %38 = tpu.matmul %35, %37, %cst_32 {dimension_numbers = #tpu.dot_dimension_numbers<[1], [0], [0], [1], [0, 0, 1, 1], [], []>} : vector<16x128xf32>, vector<128x128xf32>, vector<16x128xf32> -> vector<16x128xf32>
    %c1_33 = arith.constant 1 : index
    %c0_34 = arith.constant 0 : index
    %c0_35 = arith.constant 0 : index
    %39 = vector.load %arg7[%c1_33, %c0_34, %c0_35] : memref<2x1x128xf32, #tpu.memory_space<vmem>>, vector<1x1x128xf32>
    %40 = vector.shape_cast %39 : vector<1x1x128xf32> to vector<1x128xf32>
    %41 = vector.broadcast %40 : vector<1x128xf32> to vector<16x128xf32>
    %42 = arith.addf %38, %41 : vector<16x128xf32>
    %43 = arith.addf %24, %42 : vector<16x128xf32>
    %c0_36 = arith.constant 0 : index
    %c0_37 = arith.constant 0 : index
    %44 = vector.load %arg8[%c0_36, %c0_37] : memref<128x128xf32, #tpu.memory_space<vmem>>, vector<128x128xf32>
    %cst_38 = arith.constant dense<0.000000e+00> : vector<16x128xf32>
    %45 = tpu.matmul %43, %44, %cst_38 {dimension_numbers = #tpu.dot_dimension_numbers<[1], [0], [0], [1], [0, 0, 1, 1], [], []>} : vector<16x128xf32>, vector<128x128xf32>, vector<16x128xf32> -> vector<16x128xf32>
    %c0_39 = arith.constant 0 : index
    %c0_40 = arith.constant 0 : index
    %46 = vector.load %arg9[%c0_39, %c0_40] : memref<1x128xf32, #tpu.memory_space<vmem>>, vector<1x128xf32>
    %47 = vector.broadcast %46 : vector<1x128xf32> to vector<16x128xf32>
    %48 = arith.addf %45, %47 : vector<16x128xf32>
    %c0_41 = arith.constant 0 : index
    %c0_42 = arith.constant 0 : index
    %49 = vector.load %arg10[%c0_41, %c0_42] : memref<16x128xf32, #tpu.memory_space<vmem>>, vector<16x128xf32>
    tpu.vector_store %arg10[%c0_41, %c0_42], %48 {strides = array<i32>} : memref<16x128xf32, #tpu.memory_space<vmem>>, vector<16x128xf32>,
    return
  }
  func.func @transform_0(%arg0: i32) -> (i32, i32) {
    %c0_i32 = arith.constant 0 : i32
    %c0_i32_0 = arith.constant 0 : i32
    return %arg0, %c0_i32 : i32, i32
  }
  func.func @transform_1(%arg0: i32) -> (i32, i32) {
    %c0_i32 = arith.constant 0 : i32
    %c0_i32_0 = arith.constant 0 : i32
    %c0_i32_1 = arith.constant 0 : i32
    return %c0_i32, %c0_i32_0 : i32, i32
  }
  func.func @transform_2(%arg0: i32) -> (i32, i32) {
    %c0_i32 = arith.constant 0 : i32
    %c0_i32_0 = arith.constant 0 : i32
    %c0_i32_1 = arith.constant 0 : i32
    return %c0_i32, %c0_i32_0 : i32, i32
  }
  func.func @transform_3(%arg0: i32) -> (i32, i32, i32) {
    %c0_i32 = arith.constant 0 : i32
    %c0_i32_0 = arith.constant 0 : i32
    %c0_i32_1 = arith.constant 0 : i32
    %c0_i32_2 = arith.constant 0 : i32
    return %c0_i32, %c0_i32_0, %c0_i32_1 : i32, i32, i32
  }
  func.func @transform_4(%arg0: i32) -> (i32, i32, i32) {
    %c0_i32 = arith.constant 0 : i32
    %c0_i32_0 = arith.constant 0 : i32
    %c0_i32_1 = arith.constant 0 : i32
    %c0_i32_2 = arith.constant 0 : i32
    return %c0_i32, %c0_i32_0, %c0_i32_1 : i32, i32, i32
  }
  func.func @transform_5(%arg0: i32) -> (i32, i32, i32) {
    %c0_i32 = arith.constant 0 : i32
    %c0_i32_0 = arith.constant 0 : i32
    %c0_i32_1 = arith.constant 0 : i32
    %c0_i32_2 = arith.constant 0 : i32
    return %c0_i32, %c0_i32_0, %c0_i32_1 : i32, i32, i32
  }
  func.func @transform_6(%arg0: i32) -> (i32, i32, i32) {
    %c0_i32 = arith.constant 0 : i32
    %c0_i32_0 = arith.constant 0 : i32
    %c0_i32_1 = arith.constant 0 : i32
    %c0_i32_2 = arith.constant 0 : i32
    return %c0_i32, %c0_i32_0, %c0_i32_1 : i32, i32, i32
  }
  func.func @transform_7(%arg0: i32) -> (i32, i32) {
    %c0_i32 = arith.constant 0 : i32
    %c0_i32_0 = arith.constant 0 : i32
    %c0_i32_1 = arith.constant 0 : i32
    return %c0_i32, %c0_i32_0 : i32, i32
  }
  func.func @transform_8(%arg0: i32) -> (i32, i32) {
    %c0_i32 = arith.constant 0 : i32
    %c0_i32_0 = arith.constant 0 : i32
    %c0_i32_1 = arith.constant 0 : i32
    return %c0_i32, %c0_i32_0 : i32, i32
  }
  func.func @transform_9(%arg0: i32) -> (i32, i32) {
    %c0_i32 = arith.constant 0 : i32
    %c0_i32_0 = arith.constant 0 : i32
    return %arg0, %c0_i32 : i32, i32
  }
}

</mosaic_0001>

<llo_original>
// kernel: tpu_custom_call.1
$region0: #{tpu_custom_call.1}
  #allocation0 [shape = 'u32[]', space=smem, size = 0x4, offset = 0x4, fixed_abs, tag = 'smem constant byte address 0x4 - core index']
  #allocation1 [shape = 'u32[72,128]{1,0:T(1,128)}', space=vmem, size = 0x9000, scoped, tag = 'internal scratch']
  %s0 = inlined_call_operand.hbm [shape: f32[16,16], index: 0, kind: input, shape index: {}]
  %s1 = inlined_call_operand.hbm [shape: f32[16,128], index: 1, kind: input, shape index: {}]
  %s2 = inlined_call_operand.hbm [shape: f32[1,128], index: 2, kind: input, shape index: {}]
  %s3 = inlined_call_operand.hbm [shape: f32[2,128,128], index: 3, kind: input, shape index: {}]
  %s4 = inlined_call_operand.vmem [shape: f32[2,1,128], index: 4, kind: input, shape index: {}]
  %s5 = inlined_call_operand.hbm [shape: f32[2,128,128], index: 5, kind: input, shape index: {}]
  %s6 = inlined_call_operand.vmem [shape: f32[2,1,128], index: 6, kind: input, shape index: {}]
  %s7 = inlined_call_operand.hbm [shape: f32[128,128], index: 7, kind: input, shape index: {}]
  %s8 = inlined_call_operand.vmem [shape: f32[1,128], index: 8, kind: input, shape index: {}]
  %s9 = inlined_call_operand.hbm [shape: f32[16,128], index: 9, kind: output, shape index: {}]
  %s10 = sld [smem:[#allocation0]]
  $region70: #{tpu_custom_call.1} parent=0
    _
  %s12 = ssub.s32 1, %s10
  %s13 = scalar_select 0, %s12, %s10
  $region1: #{tpu_custom_call.1} parent=0
    #allocation2 [shape = 'u8[8192]{0}', space=vmem, size = 0x2000, scoped, tag = 'input window, operand 0, single buffered']
    #allocation3 [shape = 's32[1]{0}', space=sflag, size = 0x4, scoped, tag = 'scoped memory for tpu_custom_call.1']
    #allocation4 [shape = 's32[1]{0}', space=sflag, size = 0x4, scoped, tag = 'scoped memory for tpu_custom_call.1']
    #allocation5 [shape = 'u8[8192]{0}', space=vmem, size = 0x2000, scoped, tag = 'input window, operand 1, single buffered']
    #allocation6 [shape = 's32[1]{0}', space=sflag, size = 0x4, scoped, tag = 'scoped memory for tpu_custom_call.1']
    #allocation7 [shape = 'u8[512]{0}', space=vmem, size = 0x400, scoped, tag = 'input window, operand 2, single buffered']
    #allocation8 [shape = 'u8[131072]{0}', space=vmem, size = 0x20000, scoped, tag = 'input window, operand 3, single buffered']
    #allocation9 [shape = 's32[1]{0}', space=sflag, size = 0x4, scoped, tag = 'scoped memory for tpu_custom_call.1']
    #allocation10 [shape = 'u8[131072]{0}', space=vmem, size = 0x20000, scoped, tag = 'input window, operand 5, single buffered']
    #allocation11 [shape = 'u8[65536]{0}', space=vmem, size = 0x10000, scoped, tag = 'input window, operand 7, single buffered']
    #allocation12 [shape = 's32[1]{0}', space=sflag, size = 0x4, scoped, tag = 'scoped memory for tpu_custom_call.1']
    #allocation13 [shape = 'u8[8192]{0}', space=vmem, size = 0x2000, scoped, tag = 'output window, operand 0, single buffered']
    %14 = vsyncpa [#allocation3], 0
    %15 = vsyncpa [#allocation6], 0
    %16 = vsyncpa [#allocation9], 0
    %17 = vsyncpa [#allocation12], 0
    %18 = vsyncpa [#allocation4], 0
    // Predicated region
    $region2: #{tpu_custom_call.1} parent=1 // pred_check
      _
    $region3: #{tpu_custom_call.1} parent=1 // pred_check_branch
      %20 = sbr.rel (0) target = $region5
    $region4: #{tpu_custom_call.1} parent=1 // pred_region
      %22 = vsyncadd [#allocation3], 0
      %s23 = sshll.u32 %s0, 4
      %s24 = int_to_ptr.hbm [resolvable:$true] %s23
      %s25 = sshll.u32 [#allocation2], 4
      %s26 = int_to_ptr.vmem [resolvable:$true] %s25
      %31 = dma.hbm_to_vmem [thread:$0]  %s24, 256, %s26, [#allocation3], 128, 128, 8
    $region5: #{tpu_custom_call.1} parent=1 // pred_fallthru
      _
    // Predicated region
    $region6: #{tpu_custom_call.1} parent=1 // pred_check
      _
    $region7: #{tpu_custom_call.1} parent=1 // pred_check_branch
      %33 = sbr.rel (0) target = $region9
    $region8: #{tpu_custom_call.1} parent=1 // pred_region
      %35 = vsyncadd [#allocation6], 0
      %s36 = sshll.u32 %s1, 4
      %s37 = int_to_ptr.hbm [resolvable:$true] %s36
      %s38 = sshll.u32 [#allocation5], 4
      %s39 = int_to_ptr.vmem [resolvable:$true] %s38
      %44 = dma.hbm_to_vmem [thread:$0]  %s37, 256, %s39, [#allocation6], 128, 128, 8
    $region9: #{tpu_custom_call.1} parent=1 // pred_fallthru
      _
    // Predicated region
    $region10: #{tpu_custom_call.1} parent=1 // pred_check
      _
    $region11: #{tpu_custom_call.1} parent=1 // pred_check_branch
      %46 = sbr.rel (0) target = $region13
    $region12: #{tpu_custom_call.1} parent=1 // pred_region
      %48 = vsyncadd [#allocation6], 0
      %s50 = sshll.u32 %s2, 4
      %s51 = int_to_ptr.hbm [resolvable:$true] %s50
      %s52 = sshll.u32 [#allocation7], 4
      %s53 = int_to_ptr.vmem [resolvable:$true] %s52
      %55 = dma.hbm_to_vmem [thread:$0]  %s51, 16, %s53, [#allocation6]
    $region13: #{tpu_custom_call.1} parent=1 // pred_fallthru
      _
    // Predicated region
    $region14: #{tpu_custom_call.1} parent=1 // pred_check
      _
    $region15: #{tpu_custom_call.1} parent=1 // pred_check_branch
      %57 = sbr.rel (0) target = $region17
    $region16: #{tpu_custom_call.1} parent=1 // pred_region
      %59 = vsyncadd [#allocation9], 0
      %s60 = sshll.u32 %s3, 4
      %s61 = int_to_ptr.hbm [resolvable:$true] %s60
      %s62 = sshll.u32 [#allocation8], 4
      %s63 = int_to_ptr.vmem [resolvable:$true] %s62
      %68 = dma.hbm_to_vmem [thread:$0]  %s61, 4096, %s63, [#allocation9], 128, 128, 8
    $region17: #{tpu_custom_call.1} parent=1 // pred_fallthru
      _
    // Predicated region
    $region18: #{tpu_custom_call.1} parent=1 // pred_check
      _
    $region19: #{tpu_custom_call.1} parent=1 // pred_check_branch
      %70 = sbr.rel (0) target = $region21
    $region20: #{tpu_custom_call.1} parent=1 // pred_region
      _
    $region21: #{tpu_custom_call.1} parent=1 // pred_fallthru
      _
    // Predicated region
    $region22: #{tpu_custom_call.1} parent=1 // pred_check
      _
    $region23: #{tpu_custom_call.1} parent=1 // pred_check_branch
      %72 = sbr.rel (0) target = $region25
    $region24: #{tpu_custom_call.1} parent=1 // pred_region
      %74 = vsyncadd [#allocation9], 0
      %s75 = sshll.u32 %s5, 4
      %s76 = int_to_ptr.hbm [resolvable:$true] %s75
      %s77 = sshll.u32 [#allocation10], 4
      %s78 = int_to_ptr.vmem [resolvable:$true] %s77
      %83 = dma.hbm_to_vmem [thread:$0]  %s76, 4096, %s78, [#allocation9], 128, 128, 8
    $region25: #{tpu_custom_call.1} parent=1 // pred_fallthru
      _
    // Predicated region
    $region26: #{tpu_custom_call.1} parent=1 // pred_check
      _
    $region27: #{tpu_custom_call.1} parent=1 // pred_check_branch
      %85 = sbr.rel (0) target = $region29
    $region28: #{tpu_custom_call.1} parent=1 // pred_region
      _
    $region29: #{tpu_custom_call.1} parent=1 // pred_fallthru
      _
    // Predicated region
    $region30: #{tpu_custom_call.1} parent=1 // pred_check
      _
    $region31: #{tpu_custom_call.1} parent=1 // pred_check_branch
      %87 = sbr.rel (0) target = $region33
    $region32: #{tpu_custom_call.1} parent=1 // pred_region
      %89 = vsyncadd [#allocation12], 0
      %s90 = sshll.u32 %s7, 4
      %s91 = int_to_ptr.hbm [resolvable:$true] %s90
      %s92 = sshll.u32 [#allocation11], 4
      %s93 = int_to_ptr.vmem [resolvable:$true] %s92
      %98 = dma.hbm_to_vmem [thread:$0]  %s91, 2048, %s93, [#allocation12], 128, 128, 8
    $region33: #{tpu_custom_call.1} parent=1 // pred_fallthru
      _
    // Predicated region
    $region34: #{tpu_custom_call.1} parent=1 // pred_check
      _
    $region35: #{tpu_custom_call.1} parent=1 // pred_check_branch
      %100 = sbr.rel (0) target = $region37
    $region36: #{tpu_custom_call.1} parent=1 // pred_region
      _
    $region37: #{tpu_custom_call.1} parent=1 // pred_fallthru
      _
    // Predicated region
    $region38: #{tpu_custom_call.1} parent=1 // pred_check
      _
    $region39: #{tpu_custom_call.1} parent=1 // pred_check_branch
      %102 = sbr.rel (0) target = $region41
    $region40: #{tpu_custom_call.1} parent=1 // pred_region
      %104 = dma.done [#allocation3], 256
    $region41: #{tpu_custom_call.1} parent=1 // pred_fallthru
      _
    // Predicated region
    $region42: #{tpu_custom_call.1} parent=1 // pred_check
      _
    $region43: #{tpu_custom_call.1} parent=1 // pred_check_branch
      %106 = sbr.rel (0) target = $region45
    $region44: #{tpu_custom_call.1} parent=1 // pred_region
      %108 = dma.done [#allocation6], 256
    $region45: #{tpu_custom_call.1} parent=1 // pred_fallthru
      _
    // Predicated region
    $region46: #{tpu_custom_call.1} parent=1 // pred_check
      _
    $region47: #{tpu_custom_call.1} parent=1 // pred_check_branch
      %110 = sbr.rel (0) target = $region49
    $region48: #{tpu_custom_call.1} parent=1 // pred_region
      %112 = dma.done [#allocation6], 16
    $region49: #{tpu_custom_call.1} parent=1 // pred_fallthru
      _
    // Predicated region
    $region50: #{tpu_custom_call.1} parent=1 // pred_check
      _
    $region51: #{tpu_custom_call.1} parent=1 // pred_check_branch
      %114 = sbr.rel (0) target = $region53
    $region52: #{tpu_custom_call.1} parent=1 // pred_region
      %116 = dma.done [#allocation9], 4096
    $region53: #{tpu_custom_call.1} parent=1 // pred_fallthru
      _
    // Predicated region
    $region54: #{tpu_custom_call.1} parent=1 // pred_check
      _
    $region55: #{tpu_custom_call.1} parent=1 // pred_check_branch
      %118 = sbr.rel (0) target = $region57
    $region56: #{tpu_custom_call.1} parent=1 // pred_region
      %120 = dma.done [#allocation9], 4096
    $region57: #{tpu_custom_call.1} parent=1 // pred_fallthru
      _
    // Predicated region
    $region58: #{tpu_custom_call.1} parent=1 // pred_check
      _
    $region59: #{tpu_custom_call.1} parent=1 // pred_check_branch
      %122 = sbr.rel (0) target = $region61
    $region60: #{tpu_custom_call.1} parent=1 // pred_region
      %124 = dma.done [#allocation12], 2048
    $region61: #{tpu_custom_call.1} parent=1 // pred_fallthru
      _
    %v125 = vld [vmem:[#allocation2] sm:$0xff]
    %v126 = vld [vmem:[#allocation2 + $0x8] sm:$0xff]
    %v127 = vld [vmem:[#allocation5] sm:$0xff]
    %v128 = vld [vmem:[#allocation5 + $0x8] sm:$0xff]
    %v129 = vld [vmem:[#allocation7] sm:$0x1]
    %v131 = vperm.slane %v129, 0
    %vm133 = vcmask 130048
    %v135 = vsel %vm133, %v125, 0
    %v138 = vsel %vm133, %v126, 0
    %140 = vmatpush.msra.mxu0 0.0
    %141 = vmatpush.msra.mxu0 0.0
    %142 = vmatpush.msra.mxu0 0.0
    %143 = vmatpush.msra.mxu0 0.0
    %144 = vmatpush.msra.mxu0 0.0
    %145 = vmatpush.msra.mxu0 0.0
    %146 = vmatpush.msra.mxu0 0.0
    %147 = vmatpush.msra.mxu0 0.0
    %148 = vmatpush.msra.mxu0 0.0
    %149 = vmatpush.msra.mxu0 0.0
    %150 = vmatpush.msra.mxu0 0.0
    %151 = vmatpush.msra.mxu0 0.0
    %152 = vmatpush.msra.mxu0 0.0
    %153 = vmatpush.msra.mxu0 0.0
    %154 = vmatpush.msra.mxu0 %v128
    %155 = vmatpush.msra.mxu0 %v127
    %156 = vmatmul.f32.gmra.mxu0 %v135
    %v157 = vpop.f32.mrf.mxu0
    %v158 = vadd.f32 %v131, %v157
    %159 = vmatmul.f32.gmra.mxu0 %v138
    %v160 = vpop.f32.mrf.mxu0
    %v161 = vadd.f32 %v131, %v160
    %162 = vdwg.mxu0
    %v163 = vmax.f32 %v158, 0.0
    %v164 = vmax.f32 %v161, 0.0
    %v165 = vld [vmem:[#allocation8] sm:$0xff]
    %v166 = vld [vmem:[#allocation8 + $0x8] sm:$0xff]
    %v167 = vld [vmem:[#allocation8 + $0x10] sm:$0xff]
    %v168 = vld [vmem:[#allocation8 + $0x18] sm:$0xff]
    %v169 = vld [vmem:[#allocation8 + $0x20] sm:$0xff]
    %v170 = vld [vmem:[#allocation8 + $0x28] sm:$0xff]
    %v171 = vld [vmem:[#allocation8 + $0x30] sm:$0xff]
    %v172 = vld [vmem:[#allocation8 + $0x38] sm:$0xff]
    %v173 = vld [vmem:[#allocation8 + $0x40] sm:$0xff]
    %v174 = vld [vmem:[#allocation8 + $0x48] sm:$0xff]
    %v175 = vld [vmem:[#allocation8 + $0x50] sm:$0xff]
    %v176 = vld [vmem:[#allocation8 + $0x58] sm:$0xff]
    %v177 = vld [vmem:[#allocation8 + $0x60] sm:$0xff]
    %v178 = vld [vmem:[#allocation8 + $0x68] sm:$0xff]
    %v179 = vld [vmem:[#allocation8 + $0x70] sm:$0xff]
    %v180 = vld [vmem:[#allocation8 + $0x78] sm:$0xff]
    %v181 = vld [vmem:[%s4] sm:$0x1]
    %v183 = vperm.slane %v181, 0
    %185 = vmatpush.msra.mxu0 %v180
    %186 = vmatpush.msra.mxu0 %v179
    %187 = vmatpush.msra.mxu0 %v178
    %188 = vmatpush.msra.mxu0 %v177
    %189 = vmatpush.msra.mxu0 %v176
    %190 = vmatpush.msra.mxu0 %v175
    %191 = vmatpush.msra.mxu0 %v174
    %192 = vmatpush.msra.mxu0 %v173
    %193 = vmatpush.msra.mxu0 %v172
    %194 = vmatpush.msra.mxu0 %v171
    %195 = vmatpush.msra.mxu0 %v170
    %196 = vmatpush.msra.mxu0 %v169
    %197 = vmatpush.msra.mxu0 %v168
    %198 = vmatpush.msra.mxu0 %v167
    %199 = vmatpush.msra.mxu0 %v166
    %200 = vmatpush.msra.mxu0 %v165
    %201 = vmatmul.f32.gmra.mxu0 %v163
    %v202 = vpop.f32.mrf.mxu0
    %v203 = vadd.f32 %v183, %v202
    %204 = vmatmul.f32.gmra.mxu0 %v164
    %v205 = vpop.f32.mrf.mxu0
    %v206 = vadd.f32 %v183, %v205
    %207 = vdwg.mxu0
    %v208 = vmax.f32 %v203, 0.0
    %v209 = vmax.f32 %v206, 0.0
    %v210 = vld [vmem:[#allocation10] sm:$0xff]
    %v211 = vld [vmem:[#allocation10 + $0x8] sm:$0xff]
    %v212 = vld [vmem:[#allocation10 + $0x10] sm:$0xff]
    %v213 = vld [vmem:[#allocation10 + $0x18] sm:$0xff]
    %v214 = vld [vmem:[#allocation10 + $0x20] sm:$0xff]
    %v215 = vld [vmem:[#allocation10 + $0x28] sm:$0xff]
    %v216 = vld [vmem:[#allocation10 + $0x30] sm:$0xff]
    %v217 = vld [vmem:[#allocation10 + $0x38] sm:$0xff]
    %v218 = vld [vmem:[#allocation10 + $0x40] sm:$0xff]
    %v219 = vld [vmem:[#allocation10 + $0x48] sm:$0xff]
    %v220 = vld [vmem:[#allocation10 + $0x50] sm:$0xff]
    %v221 = vld [vmem:[#allocation10 + $0x58] sm:$0xff]
    %v222 = vld [vmem:[#allocation10 + $0x60] sm:$0xff]
    %v223 = vld [vmem:[#allocation10 + $0x68] sm:$0xff]
    %v224 = vld [vmem:[#allocation10 + $0x70] sm:$0xff]
    %v225 = vld [vmem:[#allocation10 + $0x78] sm:$0xff]
    %v226 = vld [vmem:[%s6] sm:$0x1]
    %v228 = vperm.slane %v226, 0
    %230 = vmatpush.msra.mxu0 %v225
    %231 = vmatpush.msra.mxu0 %v224
    %232 = vmatpush.msra.mxu0 %v223
    %233 = vmatpush.msra.mxu0 %v222
    %234 = vmatpush.msra.mxu0 %v221
    %235 = vmatpush.msra.mxu0 %v220
    %236 = vmatpush.msra.mxu0 %v219
    %237 = vmatpush.msra.mxu0 %v218
    %238 = vmatpush.msra.mxu0 %v217
    %239 = vmatpush.msra.mxu0 %v216
    %240 = vmatpush.msra.mxu0 %v215
    %241 = vmatpush.msra.mxu0 %v214
    %242 = vmatpush.msra.mxu0 %v213
    %243 = vmatpush.msra.mxu0 %v212
    %244 = vmatpush.msra.mxu0 %v211
    %245 = vmatpush.msra.mxu0 %v210
    %246 = vmatmul.f32.gmra.mxu0 %v208
    %v247 = vpop.f32.mrf.mxu0
    %v248 = vadd.f32 %v228, %v247
    %249 = vmatmul.f32.gmra.mxu0 %v209
    %v250 = vpop.f32.mrf.mxu0
    %v251 = vadd.f32 %v228, %v250
    %252 = vdwg.mxu0
    %v253 = vadd.f32 %v158, %v248
    %v254 = vadd.f32 %v161, %v251
    %v255 = vmax.f32 %v253, 0.0
    %v256 = vmax.f32 %v254, 0.0
    %s257 = scalar_lea.vmem [#allocation8], 128
    %v258 = vld [vmem:[%s257] sm:$0xff]
    %v259 = vld [vmem:[%s257 + $0x8] sm:$0xff]
    %v260 = vld [vmem:[%s257 + $0x10] sm:$0xff]
    %v261 = vld [vmem:[%s257 + $0x18] sm:$0xff]
    %v262 = vld [vmem:[%s257 + $0x20] sm:$0xff]
    %v263 = vld [vmem:[%s257 + $0x28] sm:$0xff]
    %v264 = vld [vmem:[%s257 + $0x30] sm:$0xff]
    %v265 = vld [vmem:[%s257 + $0x38] sm:$0xff]
    %v266 = vld [vmem:[%s257 + $0x40] sm:$0xff]
    %v267 = vld [vmem:[%s257 + $0x48] sm:$0xff]
    %v268 = vld [vmem:[%s257 + $0x50] sm:$0xff]
    %v269 = vld [vmem:[%s257 + $0x58] sm:$0xff]
    %v270 = vld [vmem:[%s257 + $0x60] sm:$0xff]
    %v271 = vld [vmem:[%s257 + $0x68] sm:$0xff]
    %v272 = vld [vmem:[%s257 + $0x70] sm:$0xff]
    %v273 = vld [vmem:[%s257 + $0x78] sm:$0xff]
    %s274 = scalar_lea.vmem %s4, 1
    %v275 = vld [vmem:[%s274] sm:$0x1]
    %v277 = vperm.slane %v275, 0
    %279 = vmatpush.msra.mxu0 %v273
    %280 = vmatpush.msra.mxu0 %v272
    %281 = vmatpush.msra.mxu0 %v271
    %282 = vmatpush.msra.mxu0 %v270
    %283 = vmatpush.msra.mxu0 %v269
    %284 = vmatpush.msra.mxu0 %v268
    %285 = vmatpush.msra.mxu0 %v267
    %286 = vmatpush.msra.mxu0 %v266
    %287 = vmatpush.msra.mxu0 %v265
    %288 = vmatpush.msra.mxu0 %v264
    %289 = vmatpush.msra.mxu0 %v263
    %290 = vmatpush.msra.mxu0 %v262
    %291 = vmatpush.msra.mxu0 %v261
    %292 = vmatpush.msra.mxu0 %v260
    %293 = vmatpush.msra.mxu0 %v259
    %294 = vmatpush.msra.mxu0 %v258
    %295 = vmatmul.f32.gmra.mxu0 %v255
    %v296 = vpop.f32.mrf.mxu0
    %v297 = vadd.f32 %v277, %v296
    %298 = vmatmul.f32.gmra.mxu0 %v256
    %v299 = vpop.f32.mrf.mxu0
    %v300 = vadd.f32 %v277, %v299
    %301 = vdwg.mxu0
    %v302 = vmax.f32 %v297, 0.0
    %v303 = vmax.f32 %v300, 0.0
    %s304 = scalar_lea.vmem [#allocation10], 128
    %v305 = vld [vmem:[%s304] sm:$0xff]
    %v306 = vld [vmem:[%s304 + $0x8] sm:$0xff]
    %v307 = vld [vmem:[%s304 + $0x10] sm:$0xff]
    %v308 = vld [vmem:[%s304 + $0x18] sm:$0xff]
    %v309 = vld [vmem:[%s304 + $0x20] sm:$0xff]
    %v310 = vld [vmem:[%s304 + $0x28] sm:$0xff]
    %v311 = vld [vmem:[%s304 + $0x30] sm:$0xff]
    %v312 = vld [vmem:[%s304 + $0x38] sm:$0xff]
    %v313 = vld [vmem:[%s304 + $0x40] sm:$0xff]
    %v314 = vld [vmem:[%s304 + $0x48] sm:$0xff]
    %v315 = vld [vmem:[%s304 + $0x50] sm:$0xff]
    %v316 = vld [vmem:[%s304 + $0x58] sm:$0xff]
    %v317 = vld [vmem:[%s304 + $0x60] sm:$0xff]
    %v318 = vld [vmem:[%s304 + $0x68] sm:$0xff]
    %v319 = vld [vmem:[%s304 + $0x70] sm:$0xff]
    %v320 = vld [vmem:[%s304 + $0x78] sm:$0xff]
    %s321 = scalar_lea.vmem %s6, 1
    %v322 = vld [vmem:[%s321] sm:$0x1]
    %v324 = vperm.slane %v322, 0
    %326 = vmatpush.msra.mxu0 %v320
    %327 = vmatpush.msra.mxu0 %v319
    %328 = vmatpush.msra.mxu0 %v318
    %329 = vmatpush.msra.mxu0 %v317
    %330 = vmatpush.msra.mxu0 %v316
    %331 = vmatpush.msra.mxu0 %v315
    %332 = vmatpush.msra.mxu0 %v314
    %333 = vmatpush.msra.mxu0 %v313
    %334 = vmatpush.msra.mxu0 %v312
    %335 = vmatpush.msra.mxu0 %v311
    %336 = vmatpush.msra.mxu0 %v310
    %337 = vmatpush.msra.mxu0 %v309
    %338 = vmatpush.msra.mxu0 %v308
    %339 = vmatpush.msra.mxu0 %v307
    %340 = vmatpush.msra.mxu0 %v306
    %341 = vmatpush.msra.mxu0 %v305
    %342 = vmatmul.f32.gmra.mxu0 %v302
    %v343 = vpop.f32.mrf.mxu0
    %v344 = vadd.f32 %v324, %v343
    %345 = vmatmul.f32.gmra.mxu0 %v303
    %v346 = vpop.f32.mrf.mxu0
    %v347 = vadd.f32 %v324, %v346
    %348 = vdwg.mxu0
    %v349 = vadd.f32 %v253, %v344
    %v350 = vadd.f32 %v254, %v347
    %v351 = vld [vmem:[#allocation11] sm:$0xff]
    %v352 = vld [vmem:[#allocation11 + $0x8] sm:$0xff]
    %v353 = vld [vmem:[#allocation11 + $0x10] sm:$0xff]
    %v354 = vld [vmem:[#allocation11 + $0x18] sm:$0xff]
    %v355 = vld [vmem:[#allocation11 + $0x20] sm:$0xff]
    %v356 = vld [vmem:[#allocation11 + $0x28] sm:$0xff]
    %v357 = vld [vmem:[#allocation11 + $0x30] sm:$0xff]
    %v358 = vld [vmem:[#allocation11 + $0x38] sm:$0xff]
    %v359 = vld [vmem:[#allocation11 + $0x40] sm:$0xff]
    %v360 = vld [vmem:[#allocation11 + $0x48] sm:$0xff]
    %v361 = vld [vmem:[#allocation11 + $0x50] sm:$0xff]
    %v362 = vld [vmem:[#allocation11 + $0x58] sm:$0xff]
    %v363 = vld [vmem:[#allocation11 + $0x60] sm:$0xff]
    %v364 = vld [vmem:[#allocation11 + $0x68] sm:$0xff]
    %v365 = vld [vmem:[#allocation11 + $0x70] sm:$0xff]
    %v366 = vld [vmem:[#allocation11 + $0x78] sm:$0xff]
    %v367 = vld [vmem:[%s8] sm:$0x1]
    %v369 = vperm.slane %v367, 0
    %371 = vmatpush.msra.mxu0 %v366
    %372 = vmatpush.msra.mxu0 %v365
    %373 = vmatpush.msra.mxu0 %v364
    %374 = vmatpush.msra.mxu0 %v363
    %375 = vmatpush.msra.mxu0 %v362
    %376 = vmatpush.msra.mxu0 %v361
    %377 = vmatpush.msra.mxu0 %v360
    %378 = vmatpush.msra.mxu0 %v359
    %379 = vmatpush.msra.mxu0 %v358
    %380 = vmatpush.msra.mxu0 %v357
    %381 = vmatpush.msra.mxu0 %v356
    %382 = vmatpush.msra.mxu0 %v355
    %383 = vmatpush.msra.mxu0 %v354
    %384 = vmatpush.msra.mxu0 %v353
    %385 = vmatpush.msra.mxu0 %v352
    %386 = vmatpush.msra.mxu0 %v351
    %387 = vmatmul.f32.gmra.mxu0 %v349
    %v388 = vpop.f32.mrf.mxu0
    %v389 = vadd.f32 %v369, %v388
    %390 = vmatmul.f32.gmra.mxu0 %v350
    %v391 = vpop.f32.mrf.mxu0
    %v392 = vadd.f32 %v369, %v391
    %393 = vdwg.mxu0
    %394 = vst [vmem:[#allocation13] sm:$0xff] %v389
    %395 = vst [vmem:[#allocation13 + $0x8] sm:$0xff] %v392
    // Predicated region
    $region62: #{tpu_custom_call.1} parent=1 // pred_check
      _
    $region63: #{tpu_custom_call.1} parent=1 // pred_check_branch
      %397 = sbr.rel (0) target = $region65
    $region64: #{tpu_custom_call.1} parent=1 // pred_region
      %399 = vsyncadd [#allocation4], 0
      %s400 = sshll.u32 [#allocation13], 4
      %s401 = int_to_ptr.vmem [resolvable:$true] %s400
      %s402 = sshll.u32 %s9, 4
      %s403 = int_to_ptr.hbm [resolvable:$true] %s402
      %408 = dma.vmem_to_hbm [thread:$0]  %s401, 256, %s403, [#allocation4], 128, 128, 8
    $region65: #{tpu_custom_call.1} parent=1 // pred_fallthru
      _
    // Predicated region
    $region66: #{tpu_custom_call.1} parent=1 // pred_check
      _
    $region67: #{tpu_custom_call.1} parent=1 // pred_check_branch
      %410 = sbr.rel (0) target = $region69
    $region68: #{tpu_custom_call.1} parent=1 // pred_region
      %412 = dma.done [#allocation4], 256
    $region69: #{tpu_custom_call.1} parent=1 // pred_fallthru
      _
    %413 = vsyncpa [#allocation3], 1
    %414 = vsyncpa [#allocation6], 1
    %415 = vsyncpa [#allocation9], 1
    %416 = vsyncpa [#allocation12], 1
    %417 = vsyncpa [#allocation4], 1

// kernel: tpu_custom_call.1
$region0: #{tpu_custom_call.1}
  #allocation0 [shape = 'u32[]', space=smem, size = 0x4, offset = 0x4, fixed_abs, tag = 'smem constant byte address 0x4 - core index']
  #allocation1 [shape = 'u32[72,128]{1,0:T(1,128)}', space=vmem, size = 0x9000, scoped, tag = 'internal scratch']
  %s0 = inlined_call_operand.hbm [shape: f32[16,16], index: 0, kind: input, shape index: {}]
  %s1 = inlined_call_operand.hbm [shape: f32[16,128], index: 1, kind: input, shape index: {}]
  %s2 = inlined_call_operand.hbm [shape: f32[1,128], index: 2, kind: input, shape index: {}]
  %s3 = inlined_call_operand.hbm [shape: f32[2,128,128], index: 3, kind: input, shape index: {}]
  %s4 = inlined_call_operand.vmem [shape: f32[2,1,128], index: 4, kind: input, shape index: {}]
  %s5 = inlined_call_operand.hbm [shape: f32[2,128,128], index: 5, kind: input, shape index: {}]
  %s6 = inlined_call_operand.vmem [shape: f32[2,1,128], index: 6, kind: input, shape index: {}]
  %s7 = inlined_call_operand.hbm [shape: f32[128,128], index: 7, kind: input, shape index: {}]
  %s8 = inlined_call_operand.vmem [shape: f32[1,128], index: 8, kind: input, shape index: {}]
  %s9 = inlined_call_operand.hbm [shape: f32[16,128], index: 9, kind: output, shape index: {}]
  %s10 = sld [smem:[#allocation0]]
  $region70: #{tpu_custom_call.1} parent=0
    _
  %s12 = ssub.s32 1, %s10
  %s13 = scalar_select 0, %s12, %s10
  $region1: #{tpu_custom_call.1} parent=0
    #allocation2 [shape = 'u8[8192]{0}', space=vmem, size = 0x2000, scoped, tag = 'input window, operand 0, single buffered']
    #allocation3 [shape = 's32[1]{0}', space=sflag, size = 0x4, scoped, tag = 'scoped memory for tpu_custom_call.1']
    #allocation4 [shape = 's32[1]{0}', space=sflag, size = 0x4, scoped, tag = 'scoped memory for tpu_custom_call.1']
    #allocation5 [shape = 'u8[8192]{0}', space=vmem, size = 0x2000, scoped, tag = 'input window, operand 1, single buffered']
    #allocation6 [shape = 's32[1]{0}', space=sflag, size = 0x4, scoped, tag = 'scoped memory for tpu_custom_call.1']
    #allocation7 [shape = 'u8[512]{0}', space=vmem, size = 0x400, scoped, tag = 'input window, operand 2, single buffered']
    #allocation8 [shape = 'u8[131072]{0}', space=vmem, size = 0x20000, scoped, tag = 'input window, operand 3, single buffered']
    #allocation9 [shape = 's32[1]{0}', space=sflag, size = 0x4, scoped, tag = 'scoped memory for tpu_custom_call.1']
    #allocation10 [shape = 'u8[131072]{0}', space=vmem, size = 0x20000, scoped, tag = 'input window, operand 5, single buffered']
    #allocation11 [shape = 'u8[65536]{0}', space=vmem, size = 0x10000, scoped, tag = 'input window, operand 7, single buffered']
    #allocation12 [shape = 's32[1]{0}', space=sflag, size = 0x4, scoped, tag = 'scoped memory for tpu_custom_call.1']
    #allocation13 [shape = 'u8[8192]{0}', space=vmem, size = 0x2000, scoped, tag = 'output window, operand 0, single buffered']
    %14 = vsyncpa [#allocation3], 0
    %15 = vsyncpa [#allocation6], 0
    %16 = vsyncpa [#allocation9], 0
    %17 = vsyncpa [#allocation12], 0
    %18 = vsyncpa [#allocation4], 0
    // Predicated region
    $region2: #{tpu_custom_call.1} parent=1 // pred_check
      _
    $region3: #{tpu_custom_call.1} parent=1 // pred_check_branch
      %20 = sbr.rel (0) target = $region5
    $region4: #{tpu_custom_call.1} parent=1 // pred_region
      %22 = vsyncadd [#allocation3], 0
      %s23 = sshll.u32 %s0, 4
      %s24 = int_to_ptr.hbm [resolvable:$true] %s23
      %s25 = sshll.u32 [#allocation2], 4
      %s26 = int_to_ptr.vmem [resolvable:$true] %s25
      %31 = dma.hbm_to_vmem [thread:$0]  %s24, 256, %s26, [#allocation3], 128, 128, 8
    $region5: #{tpu_custom_call.1} parent=1 // pred_fallthru
      _
    // Predicated region
    $region6: #{tpu_custom_call.1} parent=1 // pred_check
      _
    $region7: #{tpu_custom_call.1} parent=1 // pred_check_branch
      %33 = sbr.rel (0) target = $region9
    $region8: #{tpu_custom_call.1} parent=1 // pred_region
      %35 = vsyncadd [#allocation6], 0
      %s36 = sshll.u32 %s1, 4
      %s37 = int_to_ptr.hbm [resolvable:$true] %s36
      %s38 = sshll.u32 [#allocation5], 4
      %s39 = int_to_ptr.vmem [resolvable:$true] %s38
      %44 = dma.hbm_to_vmem [thread:$0]  %s37, 256, %s39, [#allocation6], 128, 128, 8
    $region9: #{tpu_custom_call.1} parent=1 // pred_fallthru
      _
    // Predicated region
    $region10: #{tpu_custom_call.1} parent=1 // pred_check
      _
    $region11: #{tpu_custom_call.1} parent=1 // pred_check_branch
      %46 = sbr.rel (0) target = $region13
    $region12: #{tpu_custom_call.1} parent=1 // pred_region
      %48 = vsyncadd [#allocation6], 0
      %s50 = sshll.u32 %s2, 4
      %s51 = int_to_ptr.hbm [resolvable:$true] %s50
      %s52 = sshll.u32 [#allocation7], 4
      %s53 = int_to_ptr.vmem [resolvable:$true] %s52
      %55 = dma.hbm_to_vmem [thread:$0]  %s51, 16, %s53, [#allocation6]
    $region13: #{tpu_custom_call.1} parent=1 // pred_fallthru
      _
    // Predicated region
    $region14: #{tpu_custom_call.1} parent=1 // pred_check
      _
    $region15: #{tpu_custom_call.1} parent=1 // pred_check_branch
      %57 = sbr.rel (0) target = $region17
    $region16: #{tpu_custom_call.1} parent=1 // pred_region
      %59 = vsyncadd [#allocation9], 0
      %s60 = sshll.u32 %s3, 4
      %s61 = int_to_ptr.hbm [resolvable:$true] %s60
      %s62 = sshll.u32 [#allocation8], 4
      %s63 = int_to_ptr.vmem [resolvable:$true] %s62
      %68 = dma.hbm_to_vmem [thread:$0]  %s61, 4096, %s63, [#allocation9], 128, 128, 8
    $region17: #{tpu_custom_call.1} parent=1 // pred_fallthru
      _
    // Predicated region
    $region18: #{tpu_custom_call.1} parent=1 // pred_check
      _
    $region19: #{tpu_custom_call.1} parent=1 // pred_check_branch
      %70 = sbr.rel (0) target = $region21
    $region20: #{tpu_custom_call.1} parent=1 // pred_region
      _
    $region21: #{tpu_custom_call.1} parent=1 // pred_fallthru
      _
    // Predicated region
    $region22: #{tpu_custom_call.1} parent=1 // pred_check
      _
    $region23: #{tpu_custom_call.1} parent=1 // pred_check_branch
      %72 = sbr.rel (0) target = $region25
    $region24: #{tpu_custom_call.1} parent=1 // pred_region
      %74 = vsyncadd [#allocation9], 0
      %s75 = sshll.u32 %s5, 4
      %s76 = int_to_ptr.hbm [resolvable:$true] %s75
      %s77 = sshll.u32 [#allocation10], 4
      %s78 = int_to_ptr.vmem [resolvable:$true] %s77
      %83 = dma.hbm_to_vmem [thread:$0]  %s76, 4096, %s78, [#allocation9], 128, 128, 8
    $region25: #{tpu_custom_call.1} parent=1 // pred_fallthru
      _
    // Predicated region
    $region26: #{tpu_custom_call.1} parent=1 // pred_check
      _
    $region27: #{tpu_custom_call.1} parent=1 // pred_check_branch
      %85 = sbr.rel (0) target = $region29
    $region28: #{tpu_custom_call.1} parent=1 // pred_region
      _
    $region29: #{tpu_custom_call.1} parent=1 // pred_fallthru
      _
    // Predicated region
    $region30: #{tpu_custom_call.1} parent=1 // pred_check
      _
    $region31: #{tpu_custom_call.1} parent=1 // pred_check_branch
      %87 = sbr.rel (0) target = $region33
    $region32: #{tpu_custom_call.1} parent=1 // pred_region
      %89 = vsyncadd [#allocation12], 0
      %s90 = sshll.u32 %s7, 4
      %s91 = int_to_ptr.hbm [resolvable:$true] %s90
      %s92 = sshll.u32 [#allocation11], 4
      %s93 = int_to_ptr.vmem [resolvable:$true] %s92
      %98 = dma.hbm_to_vmem [thread:$0]  %s91, 2048, %s93, [#allocation12], 128, 128, 8
    $region33: #{tpu_custom_call.1} parent=1 // pred_fallthru
      _
    // Predicated region
    $region34: #{tpu_custom_call.1} parent=1 // pred_check
      _
    $region35: #{tpu_custom_call.1} parent=1 // pred_check_branch
      %100 = sbr.rel (0) target = $region37
    $region36: #{tpu_custom_call.1} parent=1 // pred_region
      _
    $region37: #{tpu_custom_call.1} parent=1 // pred_fallthru
      _
    // Predicated region
    $region38: #{tpu_custom_call.1} parent=1 // pred_check
      _
    $region39: #{tpu_custom_call.1} parent=1 // pred_check_branch
      %102 = sbr.rel (0) target = $region41
    $region40: #{tpu_custom_call.1} parent=1 // pred_region
      %104 = dma.done [#allocation3], 256
    $region41: #{tpu_custom_call.1} parent=1 // pred_fallthru
      _
    // Predicated region
    $region42: #{tpu_custom_call.1} parent=1 // pred_check
      _
    $region43: #{tpu_custom_call.1} parent=1 // pred_check_branch
      %106 = sbr.rel (0) target = $region45
    $region44: #{tpu_custom_call.1} parent=1 // pred_region
      %108 = dma.done [#allocation6], 256
    $region45: #{tpu_custom_call.1} parent=1 // pred_fallthru
      _
    // Predicated region
    $region46: #{tpu_custom_call.1} parent=1 // pred_check
      _
    $region47: #{tpu_custom_call.1} parent=1 // pred_check_branch
      %110 = sbr.rel (0) target = $region49
    $region48: #{tpu_custom_call.1} parent=1 // pred_region
      %112 = dma.done [#allocation6], 16
    $region49: #{tpu_custom_call.1} parent=1 // pred_fallthru
      _
    // Predicated region
    $region50: #{tpu_custom_call.1} parent=1 // pred_check
      _
    $region51: #{tpu_custom_call.1} parent=1 // pred_check_branch
      %114 = sbr.rel (0) target = $region53
    $region52: #{tpu_custom_call.1} parent=1 // pred_region
      %116 = dma.done [#allocation9], 4096
    $region53: #{tpu_custom_call.1} parent=1 // pred_fallthru
      _
    // Predicated region
    $region54: #{tpu_custom_call.1} parent=1 // pred_check
      _
    $region55: #{tpu_custom_call.1} parent=1 // pred_check_branch
      %118 = sbr.rel (0) target = $region57
    $region56: #{tpu_custom_call.1} parent=1 // pred_region
      %120 = dma.done [#allocation9], 4096
    $region57: #{tpu_custom_call.1} parent=1 // pred_fallthru
      _
    // Predicated region
    $region58: #{tpu_custom_call.1} parent=1 // pred_check
      _
    $region59: #{tpu_custom_call.1} parent=1 // pred_check_branch
      %122 = sbr.rel (0) target = $region61
    $region60: #{tpu_custom_call.1} parent=1 // pred_region
      %124 = dma.done [#allocation12], 2048
    $region61: #{tpu_custom_call.1} parent=1 // pred_fallthru
      _
    %v125 = vld [vmem:[#allocation2] sm:$0xff]
    %v126 = vld [vmem:[#allocation2 + $0x8] sm:$0xff]
    %v127 = vld [vmem:[#allocation5] sm:$0xff]
    %v128 = vld [vmem:[#allocation5 + $0x8] sm:$0xff]
    %v129 = vld [vmem:[#allocation7] sm:$0x1]
    %v131 = vperm.slane %v129, 0
    %vm133 = vcmask 130048
    %v135 = vsel %vm133, %v125, 0
    %v138 = vsel %vm133, %v126, 0
    %140 = vmatpush.msra.mxu0 0.0
    %141 = vmatpush.msra.mxu0 0.0
    %142 = vmatpush.msra.mxu0 0.0
    %143 = vmatpush.msra.mxu0 0.0
    %144 = vmatpush.msra.mxu0 0.0
    %145 = vmatpush.msra.mxu0 0.0
    %146 = vmatpush.msra.mxu0 0.0
    %147 = vmatpush.msra.mxu0 0.0
    %148 = vmatpush.msra.mxu0 0.0
    %149 = vmatpush.msra.mxu0 0.0
    %150 = vmatpush.msra.mxu0 0.0
    %151 = vmatpush.msra.mxu0 0.0
    %152 = vmatpush.msra.mxu0 0.0
    %153 = vmatpush.msra.mxu0 0.0
    %154 = vmatpush.msra.mxu0 %v128
    %155 = vmatpush.msra.mxu0 %v127
    %156 = vmatmul.f32.gmra.mxu0 %v135
    %v157 = vpop.f32.mrf.mxu0
    %v158 = vadd.f32 %v131, %v157
    %159 = vmatmul.f32.gmra.mxu0 %v138
    %v160 = vpop.f32.mrf.mxu0
    %v161 = vadd.f32 %v131, %v160
    %162 = vdwg.mxu0
    %v163 = vmax.f32 %v158, 0.0
    %v164 = vmax.f32 %v161, 0.0
    %v165 = vld [vmem:[#allocation8] sm:$0xff]
    %v166 = vld [vmem:[#allocation8 + $0x8] sm:$0xff]
    %v167 = vld [vmem:[#allocation8 + $0x10] sm:$0xff]
    %v168 = vld [vmem:[#allocation8 + $0x18] sm:$0xff]
    %v169 = vld [vmem:[#allocation8 + $0x20] sm:$0xff]
    %v170 = vld [vmem:[#allocation8 + $0x28] sm:$0xff]
    %v171 = vld [vmem:[#allocation8 + $0x30] sm:$0xff]
    %v172 = vld [vmem:[#allocation8 + $0x38] sm:$0xff]
    %v173 = vld [vmem:[#allocation8 + $0x40] sm:$0xff]
    %v174 = vld [vmem:[#allocation8 + $0x48] sm:$0xff]
    %v175 = vld [vmem:[#allocation8 + $0x50] sm:$0xff]
    %v176 = vld [vmem:[#allocation8 + $0x58] sm:$0xff]
    %v177 = vld [vmem:[#allocation8 + $0x60] sm:$0xff]
    %v178 = vld [vmem:[#allocation8 + $0x68] sm:$0xff]
    %v179 = vld [vmem:[#allocation8 + $0x70] sm:$0xff]
    %v180 = vld [vmem:[#allocation8 + $0x78] sm:$0xff]
    %v181 = vld [vmem:[%s4] sm:$0x1]
    %v183 = vperm.slane %v181, 0
    %185 = vmatpush.msra.mxu0 %v180
    %186 = vmatpush.msra.mxu0 %v179
    %187 = vmatpush.msra.mxu0 %v178
    %188 = vmatpush.msra.mxu0 %v177
    %189 = vmatpush.msra.mxu0 %v176
    %190 = vmatpush.msra.mxu0 %v175
    %191 = vmatpush.msra.mxu0 %v174
    %192 = vmatpush.msra.mxu0 %v173
    %193 = vmatpush.msra.mxu0 %v172
    %194 = vmatpush.msra.mxu0 %v171
    %195 = vmatpush.msra.mxu0 %v170
    %196 = vmatpush.msra.mxu0 %v169
    %197 = vmatpush.msra.mxu0 %v168
    %198 = vmatpush.msra.mxu0 %v167
    %199 = vmatpush.msra.mxu0 %v166
    %200 = vmatpush.msra.mxu0 %v165
    %201 = vmatmul.f32.gmra.mxu0 %v163
    %v202 = vpop.f32.mrf.mxu0
    %v203 = vadd.f32 %v183, %v202
    %204 = vmatmul.f32.gmra.mxu0 %v164
    %v205 = vpop.f32.mrf.mxu0
    %v206 = vadd.f32 %v183, %v205
    %207 = vdwg.mxu0
    %v208 = vmax.f32 %v203, 0.0
    %v209 = vmax.f32 %v206, 0.0
    %v210 = vld [vmem:[#allocation10] sm:$0xff]
    %v211 = vld [vmem:[#allocation10 + $0x8] sm:$0xff]
    %v212 = vld [vmem:[#allocation10 + $0x10] sm:$0xff]
    %v213 = vld [vmem:[#allocation10 + $0x18] sm:$0xff]
    %v214 = vld [vmem:[#allocation10 + $0x20] sm:$0xff]
    %v215 = vld [vmem:[#allocation10 + $0x28] sm:$0xff]
    %v216 = vld [vmem:[#allocation10 + $0x30] sm:$0xff]
    %v217 = vld [vmem:[#allocation10 + $0x38] sm:$0xff]
    %v218 = vld [vmem:[#allocation10 + $0x40] sm:$0xff]
    %v219 = vld [vmem:[#allocation10 + $0x48] sm:$0xff]
    %v220 = vld [vmem:[#allocation10 + $0x50] sm:$0xff]
    %v221 = vld [vmem:[#allocation10 + $0x58] sm:$0xff]
    %v222 = vld [vmem:[#allocation10 + $0x60] sm:$0xff]
    %v223 = vld [vmem:[#allocation10 + $0x68] sm:$0xff]
    %v224 = vld [vmem:[#allocation10 + $0x70] sm:$0xff]
    %v225 = vld [vmem:[#allocation10 + $0x78] sm:$0xff]
    %v226 = vld [vmem:[%s6] sm:$0x1]
    %v228 = vperm.slane %v226, 0
    %230 = vmatpush.msra.mxu0 %v225
    %231 = vmatpush.msra.mxu0 %v224
    %232 = vmatpush.msra.mxu0 %v223
    %233 = vmatpush.msra.mxu0 %v222
    %234 = vmatpush.msra.mxu0 %v221
    %235 = vmatpush.msra.mxu0 %v220
    %236 = vmatpush.msra.mxu0 %v219
    %237 = vmatpush.msra.mxu0 %v218
    %238 = vmatpush.msra.mxu0 %v217
    %239 = vmatpush.msra.mxu0 %v216
    %240 = vmatpush.msra.mxu0 %v215
    %241 = vmatpush.msra.mxu0 %v214
    %242 = vmatpush.msra.mxu0 %v213
    %243 = vmatpush.msra.mxu0 %v212
    %244 = vmatpush.msra.mxu0 %v211
    %245 = vmatpush.msra.mxu0 %v210
    %246 = vmatmul.f32.gmra.mxu0 %v208
    %v247 = vpop.f32.mrf.mxu0
    %v248 = vadd.f32 %v228, %v247
    %249 = vmatmul.f32.gmra.mxu0 %v209
    %v250 = vpop.f32.mrf.mxu0
    %v251 = vadd.f32 %v228, %v250
    %252 = vdwg.mxu0
    %v253 = vadd.f32 %v158, %v248
    %v254 = vadd.f32 %v161, %v251
    %v255 = vmax.f32 %v253, 0.0
    %v256 = vmax.f32 %v254, 0.0
    %s257 = scalar_lea.vmem [#allocation8], 128
    %v258 = vld [vmem:[%s257] sm:$0xff]
    %v259 = vld [vmem:[%s257 + $0x8] sm:$0xff]
    %v260 = vld [vmem:[%s257 + $0x10] sm:$0xff]
    %v261 = vld [vmem:[%s257 + $0x18] sm:$0xff]
    %v262 = vld [vmem:[%s257 + $0x20] sm:$0xff]
    %v263 = vld [vmem:[%s257 + $0x28] sm:$0xff]
    %v264 = vld [vmem:[%s257 + $0x30] sm:$0xff]
    %v265 = vld [vmem:[%s257 + $0x38] sm:$0xff]
    %v266 = vld [vmem:[%s257 + $0x40] sm:$0xff]
    %v267 = vld [vmem:[%s257 + $0x48] sm:$0xff]
    %v268 = vld [vmem:[%s257 + $0x50] sm:$0xff]
    %v269 = vld [vmem:[%s257 + $0x58] sm:$0xff]
    %v270 = vld [vmem:[%s257 + $0x60] sm:$0xff]
    %v271 = vld [vmem:[%s257 + $0x68] sm:$0xff]
    %v272 = vld [vmem:[%s257 + $0x70] sm:$0xff]
    %v273 = vld [vmem:[%s257 + $0x78] sm:$0xff]
    %s274 = scalar_lea.vmem %s4, 1
    %v275 = vld [vmem:[%s274] sm:$0x1]
    %v277 = vperm.slane %v275, 0
    %279 = vmatpush.msra.mxu0 %v273
    %280 = vmatpush.msra.mxu0 %v272
    %281 = vmatpush.msra.mxu0 %v271
    %282 = vmatpush.msra.mxu0 %v270
    %283 = vmatpush.msra.mxu0 %v269
    %284 = vmatpush.msra.mxu0 %v268
    %285 = vmatpush.msra.mxu0 %v267
    %286 = vmatpush.msra.mxu0 %v266
    %287 = vmatpush.msra.mxu0 %v265
    %288 = vmatpush.msra.mxu0 %v264
    %289 = vmatpush.msra.mxu0 %v263
    %290 = vmatpush.msra.mxu0 %v262
    %291 = vmatpush.msra.mxu0 %v261
    %292 = vmatpush.msra.mxu0 %v260
    %293 = vmatpush.msra.mxu0 %v259
    %294 = vmatpush.msra.mxu0 %v258
    %295 = vmatmul.f32.gmra.mxu0 %v255
    %v296 = vpop.f32.mrf.mxu0
    %v297 = vadd.f32 %v277, %v296
    %298 = vmatmul.f32.gmra.mxu0 %v256
    %v299 = vpop.f32.mrf.mxu0
    %v300 = vadd.f32 %v277, %v299
    %301 = vdwg.mxu0
    %v302 = vmax.f32 %v297, 0.0
    %v303 = vmax.f32 %v300, 0.0
    %s304 = scalar_lea.vmem [#allocation10], 128
    %v305 = vld [vmem:[%s304] sm:$0xff]
    %v306 = vld [vmem:[%s304 + $0x8] sm:$0xff]
    %v307 = vld [vmem:[%s304 + $0x10] sm:$0xff]
    %v308 = vld [vmem:[%s304 + $0x18] sm:$0xff]
    %v309 = vld [vmem:[%s304 + $0x20] sm:$0xff]
    %v310 = vld [vmem:[%s304 + $0x28] sm:$0xff]
    %v311 = vld [vmem:[%s304 + $0x30] sm:$0xff]
    %v312 = vld [vmem:[%s304 + $0x38] sm:$0xff]
    %v313 = vld [vmem:[%s304 + $0x40] sm:$0xff]
    %v314 = vld [vmem:[%s304 + $0x48] sm:$0xff]
    %v315 = vld [vmem:[%s304 + $0x50] sm:$0xff]
    %v316 = vld [vmem:[%s304 + $0x58] sm:$0xff]
    %v317 = vld [vmem:[%s304 + $0x60] sm:$0xff]
    %v318 = vld [vmem:[%s304 + $0x68] sm:$0xff]
    %v319 = vld [vmem:[%s304 + $0x70] sm:$0xff]
    %v320 = vld [vmem:[%s304 + $0x78] sm:$0xff]
    %s321 = scalar_lea.vmem %s6, 1
    %v322 = vld [vmem:[%s321] sm:$0x1]
    %v324 = vperm.slane %v322, 0
    %326 = vmatpush.msra.mxu0 %v320
    %327 = vmatpush.msra.mxu0 %v319
    %328 = vmatpush.msra.mxu0 %v318
    %329 = vmatpush.msra.mxu0 %v317
    %330 = vmatpush.msra.mxu0 %v316
    %331 = vmatpush.msra.mxu0 %v315
    %332 = vmatpush.msra.mxu0 %v314
    %333 = vmatpush.msra.mxu0 %v313
    %334 = vmatpush.msra.mxu0 %v312
    %335 = vmatpush.msra.mxu0 %v311
    %336 = vmatpush.msra.mxu0 %v310
    %337 = vmatpush.msra.mxu0 %v309
    %338 = vmatpush.msra.mxu0 %v308
    %339 = vmatpush.msra.mxu0 %v307
    %340 = vmatpush.msra.mxu0 %v306
    %341 = vmatpush.msra.mxu0 %v305
    %342 = vmatmul.f32.gmra.mxu0 %v302
    %v343 = vpop.f32.mrf.mxu0
    %v344 = vadd.f32 %v324, %v343
    %345 = vmatmul.f32.gmra.mxu0 %v303
    %v346 = vpop.f32.mrf.mxu0
    %v347 = vadd.f32 %v324, %v346
    %348 = vdwg.mxu0
    %v349 = vadd.f32 %v253, %v344
    %v350 = vadd.f32 %v254, %v347
    %v351 = vld [vmem:[#allocation11] sm:$0xff]
    %v352 = vld [vmem:[#allocation11 + $0x8] sm:$0xff]
    %v353 = vld [vmem:[#allocation11 + $0x10] sm:$0xff]
    %v354 = vld [vmem:[#allocation11 + $0x18] sm:$0xff]
    %v355 = vld [vmem:[#allocation11 + $0x20] sm:$0xff]
    %v356 = vld [vmem:[#allocation11 + $0x28] sm:$0xff]
    %v357 = vld [vmem:[#allocation11 + $0x30] sm:$0xff]
    %v358 = vld [vmem:[#allocation11 + $0x38] sm:$0xff]
    %v359 = vld [vmem:[#allocation11 + $0x40] sm:$0xff]
    %v360 = vld [vmem:[#allocation11 + $0x48] sm:$0xff]
    %v361 = vld [vmem:[#allocation11 + $0x50] sm:$0xff]
    %v362 = vld [vmem:[#allocation11 + $0x58] sm:$0xff]
    %v363 = vld [vmem:[#allocation11 + $0x60] sm:$0xff]
    %v364 = vld [vmem:[#allocation11 + $0x68] sm:$0xff]
    %v365 = vld [vmem:[#allocation11 + $0x70] sm:$0xff]
    %v366 = vld [vmem:[#allocation11 + $0x78] sm:$0xff]
    %v367 = vld [vmem:[%s8] sm:$0x1]
    %v369 = vperm.slane %v367, 0
    %371 = vmatpush.msra.mxu0 %v366
    %372 = vmatpush.msra.mxu0 %v365
    %373 = vmatpush.msra.mxu0 %v364
    %374 = vmatpush.msra.mxu0 %v363
    %375 = vmatpush.msra.mxu0 %v362
    %376 = vmatpush.msra.mxu0 %v361
    %377 = vmatpush.msra.mxu0 %v360
    %378 = vmatpush.msra.mxu0 %v359
    %379 = vmatpush.msra.mxu0 %v358
    %380 = vmatpush.msra.mxu0 %v357
    %381 = vmatpush.msra.mxu0 %v356
    %382 = vmatpush.msra.mxu0 %v355
    %383 = vmatpush.msra.mxu0 %v354
    %384 = vmatpush.msra.mxu0 %v353
    %385 = vmatpush.msra.mxu0 %v352
    %386 = vmatpush.msra.mxu0 %v351
    %387 = vmatmul.f32.gmra.mxu0 %v349
    %v388 = vpop.f32.mrf.mxu0
    %v389 = vadd.f32 %v369, %v388
    %390 = vmatmul.f32.gmra.mxu0 %v350
    %v391 = vpop.f32.mrf.mxu0
    %v392 = vadd.f32 %v369, %v391
    %393 = vdwg.mxu0
    %394 = vst [vmem:[#allocation13] sm:$0xff] %v389
    %395 = vst [vmem:[#allocation13 + $0x8] sm:$0xff] %v392
    // Predicated region
    $region62: #{tpu_custom_call.1} parent=1 // pred_check
      _
    $region63: #{tpu_custom_call.1} parent=1 // pred_check_branch
      %397 = sbr.rel (0) target = $region65
    $region64: #{tpu_custom_call.1} parent=1 // pred_region
      %399 = vsyncadd [#allocation4], 0
      %s400 = sshll.u32 [#allocation13], 4
      %s401 = int_to_ptr.vmem [resolvable:$true] %s400
      %s402 = sshll.u32 %s9, 4
      %s403 = int_to_ptr.hbm [resolvable:$true] %s402
      %408 = dma.vmem_to_hbm [thread:$0]  %s401, 256, %s403, [#allocation4], 128, 128, 8
    $region65: #{tpu_custom_call.1} parent=1 // pred_fallthru
      _
    // Predicated region
    $region66: #{tpu_custom_call.1} parent=1 // pred_check
      _
    $region67: #{tpu_custom_call.1} parent=1 // pred_check_branch
      %410 = sbr.rel (0) target = $region69
    $region68: #{tpu_custom_call.1} parent=1 // pred_region
      %412 = dma.done [#allocation4], 256
    $region69: #{tpu_custom_call.1} parent=1 // pred_fallthru
      _
    %413 = vsyncpa [#allocation3], 1
    %414 = vsyncpa [#allocation6], 1
    %415 = vsyncpa [#allocation9], 1
    %416 = vsyncpa [#allocation12], 1
    %417 = vsyncpa [#allocation4], 1

</llo_original>
